<compile_context>
chip_gen: v7x
topology: tpu7x:2x2x1
jax: 0.10.0
libtpu: 0.0.40
codegen_flags: <defaults>
</compile_context>

<pallas_src>
import functools
import math

import jax
import jax.numpy as jnp
from jax.experimental import pallas as pl
from jax.experimental.pallas import tpu as pltpu

MM_DTYPE = jnp.bfloat16    # matmul operand dtype (f32 accumulation)
LN_EPS = 1e-5              # PyTorch nn.LayerNorm default eps
MASK_FILL = -1e9           # matches masked_fill(mask == 0, -1000000000.0)


# -----------------------------------------------------------------------------
# Pallas kernel: one (batch element, layer) step of the fused encoder stack
# -----------------------------------------------------------------------------

def _encoder_stack_kernel(num_heads,
                          x_ref, mask_ref, pe_ref,
                          wqkv_ref, bqkv_ref, wo_ref, bo_ref,
                          g1_ref, be1_ref, w1_ref, b1_ref, w2_ref, b2_ref,
                          g2_ref, be2_ref,
                          o_ref, ctx_scratch):
    layer = pl.program_id(1)

    # Positional-encoding add fused into the first layer step; the running
    # activation then lives in the (VMEM-resident) output block across layers.
    @pl.when(layer == 0)
    def _():
        o_ref[0] = (x_ref[0] + pe_ref[0]).astype(o_ref.dtype)

    x = o_ref[0].astype(jnp.float32)                      # (S, D)
    S, D = x.shape
    H = num_heads
    dh = D // H

    # ---- fused QKV projection: ONE lane-dense (S, D) @ (D, 3D) matmul --------
    # (1/sqrt(dh) already folded into the Wq / bq columns by the wrapper.)
    qkv = jnp.dot(x.astype(MM_DTYPE), wqkv_ref[0],
                  preferred_element_type=jnp.float32) + bqkv_ref[0]   # (S, 3D)

    # ---- attention ------------------------------------------------------------
    # mask -> additive bias built in-kernel (no (B,S,S) f32 bias through HBM).
    bias = jnp.where(mask_ref[0] == 0.0,
                     jnp.float32(MASK_FILL), jnp.float32(0.0))        # (S, S)

    # Heads are processed with plain 2-D ops on static lane slices of the fused
    # qkv value (same MXU work as a batched einsum, but robust Mosaic lowering —
    # no in-vreg head reshapes/transposes).  Per-head context is written
    # head-concatenated into VMEM scratch so the output projection is a single
    # full-K matmul.  Dropout on the attention probs is eval-mode identity.
    for h in range(H):
        cols = slice(h * dh, (h + 1) * dh)
        q_h = qkv[:, cols]                                 # (S, dh), pre-scaled
        k_h = qkv[:, D + h * dh: D + (h + 1) * dh]         # (S, dh)
        v_h = qkv[:, 2 * D + h * dh: 2 * D + (h + 1) * dh] # (S, dh)

        s_h = jnp.einsum("qe,ke->qk",
                         q_h.astype(MM_DTYPE), k_h.astype(MM_DTYPE),
                         preferred_element_type=jnp.float32) + bias    # (S, S)
        s_h = s_h - jnp.max(s_h, axis=-1, keepdims=True)
        p_h = jnp.exp(s_h)
        p_h = p_h / jnp.sum(p_h, axis=-1, keepdims=True)   # exact softmax
        ctx_scratch[:, cols] = jnp.dot(p_h.astype(MM_DTYPE), v_h.astype(MM_DTYPE),
                                       preferred_element_type=jnp.float32)

    # ---- output projection: single full-K (S, D) @ (D, D) matmul --------------
    attn = jnp.dot(ctx_scratch[...].astype(MM_DTYPE), wo_ref[0],
                   preferred_element_type=jnp.float32) + bo_ref[0]

    # ---- residual + LayerNorm1 (one-pass E[x] / E[x^2] statistics) ------------
    a = x + attn
    mu1 = jnp.mean(a, axis=-1, keepdims=True)
    var1 = jnp.mean(a * a, axis=-1, keepdims=True) - mu1 * mu1
    b = (a - mu1) * jax.lax.rsqrt(var1 + LN_EPS) * g1_ref[0] + be1_ref[0]

    # ---- FeedForward (dropout = identity) --------------------------------------
    h1 = jnp.maximum(
        jnp.dot(b.astype(MM_DTYPE), w1_ref[0],
                preferred_element_type=jnp.float32) + b1_ref[0], 0.0)
    ff = jnp.dot(h1.astype(MM_DTYPE), w2_ref[0],
                 preferred_element_type=jnp.float32) + b2_ref[0]

    # ---- residual (from the pre-LN1 tensor, as in the PyTorch code) + LN2 ------
    c = a + ff
    mu2 = jnp.mean(c, axis=-1, keepdims=True)
    var2 = jnp.mean(c * c, axis=-1, keepdims=True) - mu2 * mu2
    out = (c - mu2) * jax.lax.rsqrt(var2 + LN_EPS) * g2_ref[0] + be2_ref[0]

    o_ref[0] = out.astype(o_ref.dtype)


# -----------------------------------------------------------------------------
# Wrapper: single pallas_call over the whole (batch, layer-stack) grid
# -----------------------------------------------------------------------------

def transformer_encoder(x, mask, pe, params, num_heads):
    """x: (B, S, D) f32; mask: (B, S, S), 1 = attend / 0 = masked; pe: (1, S, D)."""
    B, S, D = x.shape
    L = params["wqkv"].shape[0]
    F = params["w1"].shape[2]

    def batch_spec(shape):
        return pl.BlockSpec((1,) + shape, lambda b, l: (b, 0, 0))

    def const_spec(shape):
        return pl.BlockSpec((1,) + shape, lambda b, l: (0, 0, 0))

    def layer_spec(shape):
        return pl.BlockSpec((1,) + shape, lambda b, l: (l, 0, 0))

    in_specs = [
        batch_spec((S, D)),        # x          (read once per batch element)
        batch_spec((S, S)),        # mask       (read once per batch element)
        const_spec((S, D)),        # positional encoding (read once)
        layer_spec((D, 3 * D)),    # Wqkv (bf16, 1/sqrt(dh) folded into q cols)
        layer_spec((1, 3 * D)),    # bqkv
        layer_spec((D, D)),        # Wo   (bf16)
        layer_spec((1, D)),        # bo
        layer_spec((1, D)),        # ln1 gamma
        layer_spec((1, D)),        # ln1 beta
        layer_spec((D, F)),        # W1   (bf16)
        layer_spec((1, F)),        # b1
        layer_spec((F, D)),        # W2   (bf16)
        layer_spec((1, D)),        # b2
        layer_spec((1, D)),        # ln2 gamma
        layer_spec((1, D)),        # ln2 beta
    ]

    kern = functools.partial(_encoder_stack_kernel, num_heads)
    return pl.pallas_call(
        kern,
        out_shape=jax.ShapeDtypeStruct((B, S, D), x.dtype),
        grid=(B, L),                              # batch outer, layers inner
        in_specs=in_specs,
        out_specs=pl.BlockSpec((1, S, D), lambda b, l: (b, 0, 0)),
        scratch_shapes=[pltpu.VMEM((S, D), jnp.float32)],   # head-concat context
        compiler_params=pltpu.CompilerParams(
            dimension_semantics=("parallel", "arbitrary"),
            # tiny demo shapes; re-derive together with flash tiling at large S
            vmem_limit_bytes=64 * 1024 * 1024),
    )(x, mask, pe,
      params["wqkv"], params["bqkv"], params["wo"], params["bo"],
      params["g1"], params["be1"], params["w1"], params["b1"],
      params["w2"], params["b2"], params["g2"], params["be2"])


# -----------------------------------------------------------------------------
# Deterministic parameter / input construction
# -----------------------------------------------------------------------------

def make_positional_encoding(S, D):
    position = jnp.arange(S, dtype=jnp.float32)[:, None]
    div_term = jnp.exp(jnp.arange(0, D, 2, dtype=jnp.float32)
                       * (-math.log(10000.0) / D))
    pe = jnp.zeros((S, D), dtype=jnp.float32)
    pe = pe.at[:, 0::2].set(jnp.sin(position * div_term))
    pe = pe.at[:, 1::2].set(jnp.cos(position * div_term))
    return pe[None]                                        # (1, S, D)


def init_linear(key, fan_in, fan_out):
    # mimic PyTorch nn.Linear default init; weight stored as (in, out) so x @ W + b.
    kw, kb = jax.random.split(key)
    bound = 1.0 / math.sqrt(fan_in)
    w = jax.random.uniform(kw, (fan_in, fan_out), jnp.float32, -bound, bound)
    b = jax.random.uniform(kb, (1, fan_out), jnp.float32, -bound, bound)
    return w, b


def init_layer_params(key, D, F):
    keys = jax.random.split(key, 6)
    wq, bq = init_linear(keys[0], D, D)
    wk, bk = init_linear(keys[1], D, D)
    wv, bv = init_linear(keys[2], D, D)
    wo, bo = init_linear(keys[3], D, D)
    w1, b1 = init_linear(keys[4], D, F)
    w2, b2 = init_linear(keys[5], F, D)
    return dict(
        wq=wq, bq=bq, wk=wk, bk=bk, wv=wv, bv=bv, wo=wo, bo=bo,
        w1=w1, b1=b1, w2=w2, b2=b2,
        g1=jnp.ones((1, D), jnp.float32), be1=jnp.zeros((1, D), jnp.float32),
        g2=jnp.ones((1, D), jnp.float32), be2=jnp.zeros((1, D), jnp.float32))


def pack_params(raw_layers, num_heads, mm_dtype=MM_DTYPE):
    """Stack per-layer PyTorch-style params into the fused-stack kernel layout.

    Wq|Wk|Wv become one (D, 3D) matrix per layer (columns stay head-major /
    depth-minor exactly as PyTorch's .view(B, -1, H, dh) expects); the 1/sqrt(dh)
    score scale is folded into the Wq / bq columns.  MXU weight matrices are
    stored bf16, biases and LayerNorm affine params stay f32.
    """
    D = raw_layers[0]["wq"].shape[0]
    assert D % num_heads == 0
    scale = jnp.float32(1.0 / math.sqrt(D // num_heads))

    def stack(fn, dtype=jnp.float32):
        return jnp.stack([fn(r) for r in raw_layers]).astype(dtype)

    return dict(
        wqkv=stack(lambda r: jnp.concatenate(
            [r["wq"] * scale, r["wk"], r["wv"]], axis=1), mm_dtype),   # (L, D, 3D)
        bqkv=stack(lambda r: jnp.concatenate(
            [r["bq"] * scale, r["bk"], r["bv"]], axis=1)),             # (L, 1, 3D)
        wo=stack(lambda r: r["wo"], mm_dtype),                         # (L, D, D)
        bo=stack(lambda r: r["bo"]),                                   # (L, 1, D)
        w1=stack(lambda r: r["w1"], mm_dtype),                         # (L, D, F)
        b1=stack(lambda r: r["b1"]),                                   # (L, 1, F)
        w2=stack(lambda r: r["w2"], mm_dtype),                         # (L, F, D)
        b2=stack(lambda r: r["b2"]),                                   # (L, 1, D)
        g1=stack(lambda r: r["g1"]), be1=stack(lambda r: r["be1"]),
        g2=stack(lambda r: r["g2"]), be2=stack(lambda r: r["be2"]))


# -----------------------------------------------------------------------------

if __name__ == "__main__":
    B, S, D, H, F, NUM_LAYERS = 2, 8, 32, 4, 64, 2

    key = jax.random.PRNGKey(0)
    kx, kp = jax.random.split(key)
    x = jax.random.normal(kx, (B, S, D), jnp.float32)
    mask = jnp.ones((B, S, S), jnp.float32)                # 1 = attend everywhere

    layer_keys = jax.random.split(kp, NUM_LAYERS)
    raw_layers = [init_layer_params(k, D, F) for k in layer_keys]
    params = pack_params(raw_layers, H)
    pe = make_positional_encoding(S, D)

    fwd = jax.jit(functools.partial(transformer_encoder, num_heads=H))
    out = jax.block_until_ready(fwd(x, mask, pe, params))
    assert out.shape == (B, S, D)
    print("KERNEL_OK")
</pallas_src>

<mosaic_0001>
module attributes {stable_mosaic.version = 11 : i64} {
  func.func @_encoder_stack_kernel(%arg0: i32, %arg1: i32, %arg2: memref<1x8x32xf32, #tpu.memory_space<vmem>>, %arg3: memref<1x8x8xf32, #tpu.memory_space<vmem>>, %arg4: memref<1x8x32xf32, #tpu.memory_space<vmem>>, %arg5: memref<1x32x96xbf16, #tpu.memory_space<vmem>>, %arg6: memref<1x1x96xf32, #tpu.memory_space<vmem>>, %arg7: memref<1x32x32xbf16, #tpu.memory_space<vmem>>, %arg8: memref<1x1x32xf32, #tpu.memory_space<vmem>>, %arg9: memref<1x1x32xf32, #tpu.memory_space<vmem>>, %arg10: memref<1x1x32xf32, #tpu.memory_space<vmem>>, %arg11: memref<1x32x64xbf16, #tpu.memory_space<vmem>>, %arg12: memref<1x1x64xf32, #tpu.memory_space<vmem>>, %arg13: memref<1x64x32xbf16, #tpu.memory_space<vmem>>, %arg14: memref<1x1x32xf32, #tpu.memory_space<vmem>>, %arg15: memref<1x1x32xf32, #tpu.memory_space<vmem>>, %arg16: memref<1x1x32xf32, #tpu.memory_space<vmem>>, %arg17: memref<1x8x32xf32, #tpu.memory_space<vmem>>, %arg18: memref<8x32xf32, #tpu.memory_space<vmem>>) attributes {dimension_semantics = [#tpu.dimension_semantics<parallel>, #tpu.dimension_semantics<arbitrary>], iteration_bounds = array<i64: 2, 2>, scalar_prefetch = 0 : i64, scratch_operands = 1 : i64, tpu.core_type = #tpu.core_type<tc>, window_params = [{transform_indices = @transform_0, window_bounds = array<i64: 1, 8, 32>}, {transform_indices = @transform_1, window_bounds = array<i64: 1, 8, 8>}, {pipeline_mode = #tpu.pipeline_mode<synchronous>, transform_indices = @transform_2, window_bounds = array<i64: 1, 8, 32>}, {transform_indices = @transform_3, window_bounds = array<i64: 1, 32, 96>}, {transform_indices = @transform_4, window_bounds = array<i64: 1, 1, 96>}, {transform_indices = @transform_5, window_bounds = array<i64: 1, 32, 32>}, {transform_indices = @transform_6, window_bounds = array<i64: 1, 1, 32>}, {transform_indices = @transform_7, window_bounds = array<i64: 1, 1, 32>}, {transform_indices = @transform_8, window_bounds = array<i64: 1, 1, 32>}, {transform_indices = @transform_9, window_bounds = array<i64: 1, 32, 64>}, {transform_indices = @transform_10, window_bounds = array<i64: 1, 1, 64>}, {transform_indices = @transform_11, window_bounds = array<i64: 1, 64, 32>}, {transform_indices = @transform_12, window_bounds = array<i64: 1, 1, 32>}, {transform_indices = @transform_13, window_bounds = array<i64: 1, 1, 32>}, {transform_indices = @transform_14, window_bounds = array<i64: 1, 1, 32>}, {transform_indices = @transform_15, window_bounds = array<i64: 1, 8, 32>}]} {
    %c0_i32 = arith.constant 0 : i32
    %0 = arith.cmpi eq, %arg1, %c0_i32 : i32
    %1 = arith.extui %0 : i1 to i32
    %c0_i32_0 = arith.constant 0 : i32
    %2 = arith.cmpi ne, %1, %c0_i32_0 : i32
    scf.if %2 {
      %c0_85 = arith.constant 0 : index
      %c0_86 = arith.constant 0 : index
      %c0_87 = arith.constant 0 : index
      %184 = vector.load %arg2[%c0_85, %c0_86, %c0_87] : memref<1x8x32xf32, #tpu.memory_space<vmem>>, vector<1x8x32xf32>
      %185 = vector.shape_cast %184 : vector<1x8x32xf32> to vector<8x32xf32>
      %c0_88 = arith.constant 0 : index
      %c0_89 = arith.constant 0 : index
      %c0_90 = arith.constant 0 : index
      %186 = vector.load %arg4[%c0_88, %c0_89, %c0_90] : memref<1x8x32xf32, #tpu.memory_space<vmem>>, vector<1x8x32xf32>
      %187 = vector.shape_cast %186 : vector<1x8x32xf32> to vector<8x32xf32>
      %188 = arith.addf %185, %187 : vector<8x32xf32>
      %c0_91 = arith.constant 0 : index
      %c0_92 = arith.constant 0 : index
      %c0_93 = arith.constant 0 : index
      %189 = vector.load %arg17[%c0_91, %c0_92, %c0_93] : memref<1x8x32xf32, #tpu.memory_space<vmem>>, vector<1x8x32xf32>
      %190 = vector.shape_cast %189 : vector<1x8x32xf32> to vector<8x32xf32>
      %191 = vector.shape_cast %188 : vector<8x32xf32> to vector<1x8x32xf32>
      tpu.vector_store %arg17[%c0_91, %c0_92, %c0_93], %191 {strides = array<i32>} : memref<1x8x32xf32, #tpu.memory_space<vmem>>, vector<1x8x32xf32>,
    } else {
    }
    %c0 = arith.constant 0 : index
    %c0_1 = arith.constant 0 : index
    %c0_2 = arith.constant 0 : index
    %3 = vector.load %arg17[%c0, %c0_1, %c0_2] : memref<1x8x32xf32, #tpu.memory_space<vmem>>, vector<1x8x32xf32>
    %4 = vector.shape_cast %3 : vector<1x8x32xf32> to vector<8x32xf32>
    %5 = arith.truncf %4 : vector<8x32xf32> to vector<8x32xbf16>
    %c0_3 = arith.constant 0 : index
    %c0_4 = arith.constant 0 : index
    %c0_5 = arith.constant 0 : index
    %6 = vector.load %arg5[%c0_3, %c0_4, %c0_5] : memref<1x32x96xbf16, #tpu.memory_space<vmem>>, vector<1x32x96xbf16>
    %7 = vector.shape_cast %6 : vector<1x32x96xbf16> to vector<32x96xbf16>
    %cst = arith.constant dense<0.000000e+00> : vector<8x96xf32>
    %8 = tpu.matmul %5, %7, %cst {dimension_numbers = #tpu.dot_dimension_numbers<[1], [0], [0], [1], [0, 0, 1, 1], [], []>} : vector<8x32xbf16>, vector<32x96xbf16>, vector<8x96xf32> -> vector<8x96xf32>
    %c0_6 = arith.constant 0 : index
    %c0_7 = arith.constant 0 : index
    %c0_8 = arith.constant 0 : index
    %9 = vector.load %arg6[%c0_6, %c0_7, %c0_8] : memref<1x1x96xf32, #tpu.memory_space<vmem>>, vector<1x1x96xf32>
    %10 = vector.shape_cast %9 : vector<1x1x96xf32> to vector<1x96xf32>
    %11 = vector.broadcast %10 : vector<1x96xf32> to vector<8x96xf32>
    %12 = arith.addf %8, %11 : vector<8x96xf32>
    %c0_9 = arith.constant 0 : index
    %c0_10 = arith.constant 0 : index
    %c0_11 = arith.constant 0 : index
    %13 = vector.load %arg3[%c0_9, %c0_10, %c0_11] : memref<1x8x8xf32, #tpu.memory_space<vmem>>, vector<1x8x8xf32>
    %14 = vector.shape_cast %13 : vector<1x8x8xf32> to vector<8x8xf32>
    %cst_12 = arith.constant 0.000000e+00 : f32
    %15 = vector.broadcast %cst_12 : f32 to vector<8x8xf32>
    %16 = arith.cmpf oeq, %14, %15 : vector<8x8xf32>
    %cst_13 = arith.constant -1.000000e+09 : f32
    %cst_14 = arith.constant 0.000000e+00 : f32
    %17 = vector.broadcast %cst_13 : f32 to vector<8x8xf32>
    %18 = vector.broadcast %cst_14 : f32 to vector<8x8xf32>
    %19 = arith.select %16, %17, %18 : vector<8x8xi1>, vector<8x8xf32>
    %20 = vector.extract_strided_slice %12 {offsets = [0, 0], sizes = [8, 8], strides = [1, 1]} : vector<8x96xf32> to vector<8x8xf32>
    %21 = vector.extract_strided_slice %12 {offsets = [0, 32], sizes = [8, 8], strides = [1, 1]} : vector<8x96xf32> to vector<8x8xf32>
    %22 = vector.extract_strided_slice %12 {offsets = [0, 64], sizes = [8, 8], strides = [1, 1]} : vector<8x96xf32> to vector<8x8xf32>
    %23 = arith.truncf %20 : vector<8x8xf32> to vector<8x8xbf16>
    %24 = arith.truncf %21 : vector<8x8xf32> to vector<8x8xbf16>
    "tpu.trace_start"() <{level = 10 : i32, message = "qe,ke->qk"}> : () -> ()
    %cst_15 = arith.constant dense<0.000000e+00> : vector<8x8xf32>
    %25 = tpu.matmul %23, %24, %cst_15 {dimension_numbers = #tpu.dot_dimension_numbers<[1], [1], [0], [0], [0, 0, 1, 0], [], []>} : vector<8x8xbf16>, vector<8x8xbf16>, vector<8x8xf32> -> vector<8x8xf32>
    "tpu.trace_stop"() : () -> ()
    %26 = arith.addf %25, %19 : vector<8x8xf32>
    %cst_16 = arith.constant dense<0xFF800000> : vector<8xf32>
    %27 = vector.multi_reduction <maximumf>, %26, %cst_16 [1] : vector<8x8xf32> to vector<8xf32>
    %28 = vector.shape_cast %27 : vector<8xf32> to vector<8x1xf32>
    %29 = vector.broadcast %28 : vector<8x1xf32> to vector<8x8xf32>
    %30 = arith.subf %26, %29 : vector<8x8xf32>
    %31 = math.exp %30 : vector<8x8xf32>
    %cst_17 = arith.constant dense<0.000000e+00> : vector<8xf32>
    %32 = vector.multi_reduction <add>, %31, %cst_17 [1] : vector<8x8xf32> to vector<8xf32>
    %33 = vector.shape_cast %32 : vector<8xf32> to vector<8x1xf32>
    %34 = vector.broadcast %33 : vector<8x1xf32> to vector<8x8xf32>
    %35 = arith.divf %31, %34 : vector<8x8xf32>
    %36 = arith.truncf %35 : vector<8x8xf32> to vector<8x8xbf16>
    %37 = arith.truncf %22 : vector<8x8xf32> to vector<8x8xbf16>
    %cst_18 = arith.constant dense<0.000000e+00> : vector<8x8xf32>
    %38 = tpu.matmul %36, %37, %cst_18 {dimension_numbers = #tpu.dot_dimension_numbers<[1], [0], [0], [1], [0, 0, 1, 1], [], []>} : vector<8x8xbf16>, vector<8x8xbf16>, vector<8x8xf32> -> vector<8x8xf32>
    %c0_19 = arith.constant 0 : index
    %c0_20 = arith.constant 0 : index
    %39 = vector.load %arg18[%c0_19, %c0_20] : memref<8x32xf32, #tpu.memory_space<vmem>>, vector<8x8xf32>
    tpu.vector_store %arg18[%c0_19, %c0_20], %38 {strides = array<i32>} : memref<8x32xf32, #tpu.memory_space<vmem>>, vector<8x8xf32>,
    %40 = vector.extract_strided_slice %12 {offsets = [0, 8], sizes = [8, 8], strides = [1, 1]} : vector<8x96xf32> to vector<8x8xf32>
    %41 = vector.extract_strided_slice %12 {offsets = [0, 40], sizes = [8, 8], strides = [1, 1]} : vector<8x96xf32> to vector<8x8xf32>
    %42 = vector.extract_strided_slice %12 {offsets = [0, 72], sizes = [8, 8], strides = [1, 1]} : vector<8x96xf32> to vector<8x8xf32>
    %43 = arith.truncf %40 : vector<8x8xf32> to vector<8x8xbf16>
    %44 = arith.truncf %41 : vector<8x8xf32> to vector<8x8xbf16>
    "tpu.trace_start"() <{level = 10 : i32, message = "qe,ke->qk"}> : () -> ()
    %cst_21 = arith.constant dense<0.000000e+00> : vector<8x8xf32>
    %45 = tpu.matmul %43, %44, %cst_21 {dimension_numbers = #tpu.dot_dimension_numbers<[1], [1], [0], [0], [0, 0, 1, 0], [], []>} : vector<8x8xbf16>, vector<8x8xbf16>, vector<8x8xf32> -> vector<8x8xf32>
    "tpu.trace_stop"() : () -> ()
    %46 = arith.addf %45, %19 : vector<8x8xf32>
    %cst_22 = arith.constant dense<0xFF800000> : vector<8xf32>
    %47 = vector.multi_reduction <maximumf>, %46, %cst_22 [1] : vector<8x8xf32> to vector<8xf32>
    %48 = vector.shape_cast %47 : vector<8xf32> to vector<8x1xf32>
    %49 = vector.broadcast %48 : vector<8x1xf32> to vector<8x8xf32>
    %50 = arith.subf %46, %49 : vector<8x8xf32>
    %51 = math.exp %50 : vector<8x8xf32>
    %cst_23 = arith.constant dense<0.000000e+00> : vector<8xf32>
    %52 = vector.multi_reduction <add>, %51, %cst_23 [1] : vector<8x8xf32> to vector<8xf32>
    %53 = vector.shape_cast %52 : vector<8xf32> to vector<8x1xf32>
    %54 = vector.broadcast %53 : vector<8x1xf32> to vector<8x8xf32>
    %55 = arith.divf %51, %54 : vector<8x8xf32>
    %56 = arith.truncf %55 : vector<8x8xf32> to vector<8x8xbf16>
    %57 = arith.truncf %42 : vector<8x8xf32> to vector<8x8xbf16>
    %cst_24 = arith.constant dense<0.000000e+00> : vector<8x8xf32>
    %58 = tpu.matmul %56, %57, %cst_24 {dimension_numbers = #tpu.dot_dimension_numbers<[1], [0], [0], [1], [0, 0, 1, 1], [], []>} : vector<8x8xbf16>, vector<8x8xbf16>, vector<8x8xf32> -> vector<8x8xf32>
    %c0_25 = arith.constant 0 : index
    %c8 = arith.constant 8 : index
    %59 = vector.load %arg18[%c0_25, %c8] : memref<8x32xf32, #tpu.memory_space<vmem>>, vector<8x8xf32>
    tpu.vector_store %arg18[%c0_25, %c8], %58 {strides = array<i32>} : memref<8x32xf32, #tpu.memory_space<vmem>>, vector<8x8xf32>,
    %60 = vector.extract_strided_slice %12 {offsets = [0, 16], sizes = [8, 8], strides = [1, 1]} : vector<8x96xf32> to vector<8x8xf32>
    %61 = vector.extract_strided_slice %12 {offsets = [0, 48], sizes = [8, 8], strides = [1, 1]} : vector<8x96xf32> to vector<8x8xf32>
    %62 = vector.extract_strided_slice %12 {offsets = [0, 80], sizes = [8, 8], strides = [1, 1]} : vector<8x96xf32> to vector<8x8xf32>
    %63 = arith.truncf %60 : vector<8x8xf32> to vector<8x8xbf16>
    %64 = arith.truncf %61 : vector<8x8xf32> to vector<8x8xbf16>
    "tpu.trace_start"() <{level = 10 : i32, message = "qe,ke->qk"}> : () -> ()
    %cst_26 = arith.constant dense<0.000000e+00> : vector<8x8xf32>
    %65 = tpu.matmul %63, %64, %cst_26 {dimension_numbers = #tpu.dot_dimension_numbers<[1], [1], [0], [0], [0, 0, 1, 0], [], []>} : vector<8x8xbf16>, vector<8x8xbf16>, vector<8x8xf32> -> vector<8x8xf32>
    "tpu.trace_stop"() : () -> ()
    %66 = arith.addf %65, %19 : vector<8x8xf32>
    %cst_27 = arith.constant dense<0xFF800000> : vector<8xf32>
    %67 = vector.multi_reduction <maximumf>, %66, %cst_27 [1] : vector<8x8xf32> to vector<8xf32>
    %68 = vector.shape_cast %67 : vector<8xf32> to vector<8x1xf32>
    %69 = vector.broadcast %68 : vector<8x1xf32> to vector<8x8xf32>
    %70 = arith.subf %66, %69 : vector<8x8xf32>
    %71 = math.exp %70 : vector<8x8xf32>
    %cst_28 = arith.constant dense<0.000000e+00> : vector<8xf32>
    %72 = vector.multi_reduction <add>, %71, %cst_28 [1] : vector<8x8xf32> to vector<8xf32>
    %73 = vector.shape_cast %72 : vector<8xf32> to vector<8x1xf32>
    %74 = vector.broadcast %73 : vector<8x1xf32> to vector<8x8xf32>
    %75 = arith.divf %71, %74 : vector<8x8xf32>
    %76 = arith.truncf %75 : vector<8x8xf32> to vector<8x8xbf16>
    %77 = arith.truncf %62 : vector<8x8xf32> to vector<8x8xbf16>
    %cst_29 = arith.constant dense<0.000000e+00> : vector<8x8xf32>
    %78 = tpu.matmul %76, %77, %cst_29 {dimension_numbers = #tpu.dot_dimension_numbers<[1], [0], [0], [1], [0, 0, 1, 1], [], []>} : vector<8x8xbf16>, vector<8x8xbf16>, vector<8x8xf32> -> vector<8x8xf32>
    %c0_30 = arith.constant 0 : index
    %c16 = arith.constant 16 : index
    %79 = vector.load %arg18[%c0_30, %c16] : memref<8x32xf32, #tpu.memory_space<vmem>>, vector<8x8xf32>
    tpu.vector_store %arg18[%c0_30, %c16], %78 {strides = array<i32>} : memref<8x32xf32, #tpu.memory_space<vmem>>, vector<8x8xf32>,
    %80 = vector.extract_strided_slice %12 {offsets = [0, 24], sizes = [8, 8], strides = [1, 1]} : vector<8x96xf32> to vector<8x8xf32>
    %81 = vector.extract_strided_slice %12 {offsets = [0, 56], sizes = [8, 8], strides = [1, 1]} : vector<8x96xf32> to vector<8x8xf32>
    %82 = vector.extract_strided_slice %12 {offsets = [0, 88], sizes = [8, 8], strides = [1, 1]} : vector<8x96xf32> to vector<8x8xf32>
    %83 = arith.truncf %80 : vector<8x8xf32> to vector<8x8xbf16>
    %84 = arith.truncf %81 : vector<8x8xf32> to vector<8x8xbf16>
    "tpu.trace_start"() <{level = 10 : i32, message = "qe,ke->qk"}> : () -> ()
    %cst_31 = arith.constant dense<0.000000e+00> : vector<8x8xf32>
    %85 = tpu.matmul %83, %84, %cst_31 {dimension_numbers = #tpu.dot_dimension_numbers<[1], [1], [0], [0], [0, 0, 1, 0], [], []>} : vector<8x8xbf16>, vector<8x8xbf16>, vector<8x8xf32> -> vector<8x8xf32>
    "tpu.trace_stop"() : () -> ()
    %86 = arith.addf %85, %19 : vector<8x8xf32>
    %cst_32 = arith.constant dense<0xFF800000> : vector<8xf32>
    %87 = vector.multi_reduction <maximumf>, %86, %cst_32 [1] : vector<8x8xf32> to vector<8xf32>
    %88 = vector.shape_cast %87 : vector<8xf32> to vector<8x1xf32>
    %89 = vector.broadcast %88 : vector<8x1xf32> to vector<8x8xf32>
    %90 = arith.subf %86, %89 : vector<8x8xf32>
    %91 = math.exp %90 : vector<8x8xf32>
    %cst_33 = arith.constant dense<0.000000e+00> : vector<8xf32>
    %92 = vector.multi_reduction <add>, %91, %cst_33 [1] : vector<8x8xf32> to vector<8xf32>
    %93 = vector.shape_cast %92 : vector<8xf32> to vector<8x1xf32>
    %94 = vector.broadcast %93 : vector<8x1xf32> to vector<8x8xf32>
    %95 = arith.divf %91, %94 : vector<8x8xf32>
    %96 = arith.truncf %95 : vector<8x8xf32> to vector<8x8xbf16>
    %97 = arith.truncf %82 : vector<8x8xf32> to vector<8x8xbf16>
    %cst_34 = arith.constant dense<0.000000e+00> : vector<8x8xf32>
    %98 = tpu.matmul %96, %97, %cst_34 {dimension_numbers = #tpu.dot_dimension_numbers<[1], [0], [0], [1], [0, 0, 1, 1], [], []>} : vector<8x8xbf16>, vector<8x8xbf16>, vector<8x8xf32> -> vector<8x8xf32>
    %c0_35 = arith.constant 0 : index
    %c24 = arith.constant 24 : index
    %99 = vector.load %arg18[%c0_35, %c24] : memref<8x32xf32, #tpu.memory_space<vmem>>, vector<8x8xf32>
    tpu.vector_store %arg18[%c0_35, %c24], %98 {strides = array<i32>} : memref<8x32xf32, #tpu.memory_space<vmem>>, vector<8x8xf32>,
    %c0_36 = arith.constant 0 : index
    %c0_37 = arith.constant 0 : index
    %100 = vector.load %arg18[%c0_36, %c0_37] : memref<8x32xf32, #tpu.memory_space<vmem>>, vector<8x32xf32>
    %101 = arith.truncf %100 : vector<8x32xf32> to vector<8x32xbf16>
    %c0_38 = arith.constant 0 : index
    %c0_39 = arith.constant 0 : index
    %c0_40 = arith.constant 0 : index
    %102 = vector.load %arg7[%c0_38, %c0_39, %c0_40] : memref<1x32x32xbf16, #tpu.memory_space<vmem>>, vector<1x32x32xbf16>
    %103 = vector.shape_cast %102 : vector<1x32x32xbf16> to vector<32x32xbf16>
    %cst_41 = arith.constant dense<0.000000e+00> : vector<8x32xf32>
    %104 = tpu.matmul %101, %103, %cst_41 {dimension_numbers = #tpu.dot_dimension_numbers<[1], [0], [0], [1], [0, 0, 1, 1], [], []>} : vector<8x32xbf16>, vector<32x32xbf16>, vector<8x32xf32> -> vector<8x32xf32>
    %c0_42 = arith.constant 0 : index
    %c0_43 = arith.constant 0 : index
    %c0_44 = arith.constant 0 : index
    %105 = vector.load %arg8[%c0_42, %c0_43, %c0_44] : memref<1x1x32xf32, #tpu.memory_space<vmem>>, vector<1x1x32xf32>
    %106 = vector.shape_cast %105 : vector<1x1x32xf32> to vector<1x32xf32>
    %107 = vector.broadcast %106 : vector<1x32xf32> to vector<8x32xf32>
    %108 = arith.addf %104, %107 : vector<8x32xf32>
    %109 = arith.addf %4, %108 : vector<8x32xf32>
    %cst_45 = arith.constant dense<0.000000e+00> : vector<8xf32>
    %110 = vector.multi_reduction <add>, %109, %cst_45 [1] : vector<8x32xf32> to vector<8xf32>
    %111 = vector.shape_cast %110 : vector<8xf32> to vector<8x1xf32>
    %cst_46 = arith.constant 3.200000e+01 : f32
    %112 = vector.broadcast %cst_46 : f32 to vector<8x1xf32>
    %113 = arith.divf %111, %112 : vector<8x1xf32>
    %114 = arith.mulf %109, %109 : vector<8x32xf32>
    %cst_47 = arith.constant dense<0.000000e+00> : vector<8xf32>
    %115 = vector.multi_reduction <add>, %114, %cst_47 [1] : vector<8x32xf32> to vector<8xf32>
    %116 = vector.shape_cast %115 : vector<8xf32> to vector<8x1xf32>
    %cst_48 = arith.constant 3.200000e+01 : f32
    %117 = vector.broadcast %cst_48 : f32 to vector<8x1xf32>
    %118 = arith.divf %116, %117 : vector<8x1xf32>
    %119 = arith.mulf %113, %113 : vector<8x1xf32>
    %120 = arith.subf %118, %119 : vector<8x1xf32>
    %121 = vector.broadcast %113 : vector<8x1xf32> to vector<8x32xf32>
    %122 = arith.subf %109, %121 : vector<8x32xf32>
    %cst_49 = arith.constant 9.99999974E-6 : f32
    %123 = vector.broadcast %cst_49 : f32 to vector<8x1xf32>
    %124 = arith.addf %120, %123 : vector<8x1xf32>
    %125 = math.rsqrt %124 : vector<8x1xf32>
    %126 = vector.broadcast %125 : vector<8x1xf32> to vector<8x32xf32>
    %127 = arith.mulf %122, %126 : vector<8x32xf32>
    %c0_50 = arith.constant 0 : index
    %c0_51 = arith.constant 0 : index
    %c0_52 = arith.constant 0 : index
    %128 = vector.load %arg9[%c0_50, %c0_51, %c0_52] : memref<1x1x32xf32, #tpu.memory_space<vmem>>, vector<1x1x32xf32>
    %129 = vector.shape_cast %128 : vector<1x1x32xf32> to vector<1x32xf32>
    %130 = vector.broadcast %129 : vector<1x32xf32> to vector<8x32xf32>
    %131 = arith.mulf %127, %130 : vector<8x32xf32>
    %c0_53 = arith.constant 0 : index
    %c0_54 = arith.constant 0 : index
    %c0_55 = arith.constant 0 : index
    %132 = vector.load %arg10[%c0_53, %c0_54, %c0_55] : memref<1x1x32xf32, #tpu.memory_space<vmem>>, vector<1x1x32xf32>
    %133 = vector.shape_cast %132 : vector<1x1x32xf32> to vector<1x32xf32>
    %134 = vector.broadcast %133 : vector<1x32xf32> to vector<8x32xf32>
    %135 = arith.addf %131, %134 : vector<8x32xf32>
    %136 = arith.truncf %135 : vector<8x32xf32> to vector<8x32xbf16>
    %c0_56 = arith.constant 0 : index
    %c0_57 = arith.constant 0 : index
    %c0_58 = arith.constant 0 : index
    %137 = vector.load %arg11[%c0_56, %c0_57, %c0_58] : memref<1x32x64xbf16, #tpu.memory_space<vmem>>, vector<1x32x64xbf16>
    %138 = vector.shape_cast %137 : vector<1x32x64xbf16> to vector<32x64xbf16>
    %cst_59 = arith.constant dense<0.000000e+00> : vector<8x64xf32>
    %139 = tpu.matmul %136, %138, %cst_59 {dimension_numbers = #tpu.dot_dimension_numbers<[1], [0], [0], [1], [0, 0, 1, 1], [], []>} : vector<8x32xbf16>, vector<32x64xbf16>, vector<8x64xf32> -> vector<8x64xf32>
    %c0_60 = arith.constant 0 : index
    %c0_61 = arith.constant 0 : index
    %c0_62 = arith.constant 0 : index
    %140 = vector.load %arg12[%c0_60, %c0_61, %c0_62] : memref<1x1x64xf32, #tpu.memory_space<vmem>>, vector<1x1x64xf32>
    %141 = vector.shape_cast %140 : vector<1x1x64xf32> to vector<1x64xf32>
    %142 = vector.broadcast %141 : vector<1x64xf32> to vector<8x64xf32>
    %143 = arith.addf %139, %142 : vector<8x64xf32>
    %cst_63 = arith.constant 0.000000e+00 : f32
    %144 = vector.broadcast %cst_63 : f32 to vector<8x64xf32>
    %145 = arith.maximumf %143, %144 : vector<8x64xf32>
    %146 = arith.truncf %145 : vector<8x64xf32> to vector<8x64xbf16>
    %c0_64 = arith.constant 0 : index
    %c0_65 = arith.constant 0 : index
    %c0_66 = arith.constant 0 : index
    %147 = vector.load %arg13[%c0_64, %c0_65, %c0_66] : memref<1x64x32xbf16, #tpu.memory_space<vmem>>, vector<1x64x32xbf16>
    %148 = vector.shape_cast %147 : vector<1x64x32xbf16> to vector<64x32xbf16>
    %cst_67 = arith.constant dense<0.000000e+00> : vector<8x32xf32>
    %149 = tpu.matmul %146, %148, %cst_67 {dimension_numbers = #tpu.dot_dimension_numbers<[1], [0], [0], [1], [0, 0, 1, 1], [], []>} : vector<8x64xbf16>, vector<64x32xbf16>, vector<8x32xf32> -> vector<8x32xf32>
    %c0_68 = arith.constant 0 : index
    %c0_69 = arith.constant 0 : index
    %c0_70 = arith.constant 0 : index
    %150 = vector.load %arg14[%c0_68, %c0_69, %c0_70] : memref<1x1x32xf32, #tpu.memory_space<vmem>>, vector<1x1x32xf32>
    %151 = vector.shape_cast %150 : vector<1x1x32xf32> to vector<1x32xf32>
    %152 = vector.broadcast %151 : vector<1x32xf32> to vector<8x32xf32>
    %153 = arith.addf %149, %152 : vector<8x32xf32>
    %154 = arith.addf %109, %153 : vector<8x32xf32>
    %cst_71 = arith.constant dense<0.000000e+00> : vector<8xf32>
    %155 = vector.multi_reduction <add>, %154, %cst_71 [1] : vector<8x32xf32> to vector<8xf32>
    %156 = vector.shape_cast %155 : vector<8xf32> to vector<8x1xf32>
    %cst_72 = arith.constant 3.200000e+01 : f32
    %157 = vector.broadcast %cst_72 : f32 to vector<8x1xf32>
    %158 = arith.divf %156, %157 : vector<8x1xf32>
    %159 = arith.mulf %154, %154 : vector<8x32xf32>
    %cst_73 = arith.constant dense<0.000000e+00> : vector<8xf32>
    %160 = vector.multi_reduction <add>, %159, %cst_73 [1] : vector<8x32xf32> to vector<8xf32>
    %161 = vector.shape_cast %160 : vector<8xf32> to vector<8x1xf32>
    %cst_74 = arith.constant 3.200000e+01 : f32
    %162 = vector.broadcast %cst_74 : f32 to vector<8x1xf32>
    %163 = arith.divf %161, %162 : vector<8x1xf32>
    %164 = arith.mulf %158, %158 : vector<8x1xf32>
    %165 = arith.subf %163, %164 : vector<8x1xf32>
    %166 = vector.broadcast %158 : vector<8x1xf32> to vector<8x32xf32>
    %167 = arith.subf %154, %166 : vector<8x32xf32>
    %cst_75 = arith.constant 9.99999974E-6 : f32
    %168 = vector.broadcast %cst_75 : f32 to vector<8x1xf32>
    %169 = arith.addf %165, %168 : vector<8x1xf32>
    %170 = math.rsqrt %169 : vector<8x1xf32>
    %171 = vector.broadcast %170 : vector<8x1xf32> to vector<8x32xf32>
    %172 = arith.mulf %167, %171 : vector<8x32xf32>
    %c0_76 = arith.constant 0 : index
    %c0_77 = arith.constant 0 : index
    %c0_78 = arith.constant 0 : index
    %173 = vector.load %arg15[%c0_76, %c0_77, %c0_78] : memref<1x1x32xf32, #tpu.memory_space<vmem>>, vector<1x1x32xf32>
    %174 = vector.shape_cast %173 : vector<1x1x32xf32> to vector<1x32xf32>
    %175 = vector.broadcast %174 : vector<1x32xf32> to vector<8x32xf32>
    %176 = arith.mulf %172, %175 : vector<8x32xf32>
    %c0_79 = arith.constant 0 : index
    %c0_80 = arith.constant 0 : index
    %c0_81 = arith.constant 0 : index
    %177 = vector.load %arg16[%c0_79, %c0_80, %c0_81] : memref<1x1x32xf32, #tpu.memory_space<vmem>>, vector<1x1x32xf32>
    %178 = vector.shape_cast %177 : vector<1x1x32xf32> to vector<1x32xf32>
    %179 = vector.broadcast %178 : vector<1x32xf32> to vector<8x32xf32>
    %180 = arith.addf %176, %179 : vector<8x32xf32>
    %c0_82 = arith.constant 0 : index
    %c0_83 = arith.constant 0 : index
    %c0_84 = arith.constant 0 : index
    %181 = vector.load %arg17[%c0_82, %c0_83, %c0_84] : memref<1x8x32xf32, #tpu.memory_space<vmem>>, vector<1x8x32xf32>
    %182 = vector.shape_cast %181 : vector<1x8x32xf32> to vector<8x32xf32>
    %183 = vector.shape_cast %180 : vector<8x32xf32> to vector<1x8x32xf32>
    tpu.vector_store %arg17[%c0_82, %c0_83, %c0_84], %183 {strides = array<i32>} : memref<1x8x32xf32, #tpu.memory_space<vmem>>, vector<1x8x32xf32>,
    return
  }
  func.func @transform_0(%arg0: i32, %arg1: i32) -> (i32, i32, i32) {
    %c0_i32 = arith.constant 0 : i32
    %c0_i32_0 = arith.constant 0 : i32
    %c0_i32_1 = arith.constant 0 : i32
    return %arg0, %c0_i32, %c0_i32_0 : i32, i32, i32
  }
  func.func @transform_1(%arg0: i32, %arg1: i32) -> (i32, i32, i32) {
    %c0_i32 = arith.constant 0 : i32
    %c0_i32_0 = arith.constant 0 : i32
    %c0_i32_1 = arith.constant 0 : i32
    return %arg0, %c0_i32, %c0_i32_0 : i32, i32, i32
  }
  func.func @transform_2(%arg0: i32, %arg1: i32) -> (i32, i32, i32) {
    %c0_i32 = arith.constant 0 : i32
    %c0_i32_0 = arith.constant 0 : i32
    %c0_i32_1 = arith.constant 0 : i32
    %c0_i32_2 = arith.constant 0 : i32
    return %c0_i32, %c0_i32_0, %c0_i32_1 : i32, i32, i32
  }
  func.func @transform_3(%arg0: i32, %arg1: i32) -> (i32, i32, i32) {
    %c0_i32 = arith.constant 0 : i32
    %c0_i32_0 = arith.constant 0 : i32
    %c0_i32_1 = arith.constant 0 : i32
    return %arg1, %c0_i32, %c0_i32_0 : i32, i32, i32
  }
  func.func @transform_4(%arg0: i32, %arg1: i32) -> (i32, i32, i32) {
    %c0_i32 = arith.constant 0 : i32
    %c0_i32_0 = arith.constant 0 : i32
    %c0_i32_1 = arith.constant 0 : i32
    return %arg1, %c0_i32, %c0_i32_0 : i32, i32, i32
  }
  func.func @transform_5(%arg0: i32, %arg1: i32) -> (i32, i32, i32) {
    %c0_i32 = arith.constant 0 : i32
    %c0_i32_0 = arith.constant 0 : i32
    %c0_i32_1 = arith.constant 0 : i32
    return %arg1, %c0_i32, %c0_i32_0 : i32, i32, i32
  }
  func.func @transform_6(%arg0: i32, %arg1: i32) -> (i32, i32, i32) {
    %c0_i32 = arith.constant 0 : i32
    %c0_i32_0 = arith.constant 0 : i32
    %c0_i32_1 = arith.constant 0 : i32
    return %arg1, %c0_i32, %c0_i32_0 : i32, i32, i32
  }
  func.func @transform_7(%arg0: i32, %arg1: i32) -> (i32, i32, i32) {
    %c0_i32 = arith.constant 0 : i32
    %c0_i32_0 = arith.constant 0 : i32
    %c0_i32_1 = arith.constant 0 : i32
    return %arg1, %c0_i32, %c0_i32_0 : i32, i32, i32
  }
  func.func @transform_8(%arg0: i32, %arg1: i32) -> (i32, i32, i32) {
    %c0_i32 = arith.constant 0 : i32
    %c0_i32_0 = arith.constant 0 : i32
    %c0_i32_1 = arith.constant 0 : i32
    return %arg1, %c0_i32, %c0_i32_0 : i32, i32, i32
  }
  func.func @transform_9(%arg0: i32, %arg1: i32) -> (i32, i32, i32) {
    %c0_i32 = arith.constant 0 : i32
    %c0_i32_0 = arith.constant 0 : i32
    %c0_i32_1 = arith.constant 0 : i32
    return %arg1, %c0_i32, %c0_i32_0 : i32, i32, i32
  }
  func.func @transform_10(%arg0: i32, %arg1: i32) -> (i32, i32, i32) {
    %c0_i32 = arith.constant 0 : i32
    %c0_i32_0 = arith.constant 0 : i32
    %c0_i32_1 = arith.constant 0 : i32
    return %arg1, %c0_i32, %c0_i32_0 : i32, i32, i32
  }
  func.func @transform_11(%arg0: i32, %arg1: i32) -> (i32, i32, i32) {
    %c0_i32 = arith.constant 0 : i32
    %c0_i32_0 = arith.constant 0 : i32
    %c0_i32_1 = arith.constant 0 : i32
    return %arg1, %c0_i32, %c0_i32_0 : i32, i32, i32
  }
  func.func @transform_12(%arg0: i32, %arg1: i32) -> (i32, i32, i32) {
    %c0_i32 = arith.constant 0 : i32
    %c0_i32_0 = arith.constant 0 : i32
    %c0_i32_1 = arith.constant 0 : i32
    return %arg1, %c0_i32, %c0_i32_0 : i32, i32, i32
  }
  func.func @transform_13(%arg0: i32, %arg1: i32) -> (i32, i32, i32) {
    %c0_i32 = arith.constant 0 : i32
    %c0_i32_0 = arith.constant 0 : i32
    %c0_i32_1 = arith.constant 0 : i32
    return %arg1, %c0_i32, %c0_i32_0 : i32, i32, i32
  }
  func.func @transform_14(%arg0: i32, %arg1: i32) -> (i32, i32, i32) {
    %c0_i32 = arith.constant 0 : i32
    %c0_i32_0 = arith.constant 0 : i32
    %c0_i32_1 = arith.constant 0 : i32
    return %arg1, %c0_i32, %c0_i32_0 : i32, i32, i32
  }
  func.func @transform_15(%arg0: i32, %arg1: i32) -> (i32, i32, i32) {
    %c0_i32 = arith.constant 0 : i32
    %c0_i32_0 = arith.constant 0 : i32
    %c0_i32_1 = arith.constant 0 : i32
    return %arg0, %c0_i32, %c0_i32_0 : i32, i32, i32
  }
}

</mosaic_0001>

<llo_original>
// kernel: transformer_encoder.1
$region0: #{transformer_encoder.1}
  #allocation0 [shape = 'u32[]', space=smem, size = 0x4, offset = 0x4, fixed_abs, tag = 'smem constant byte address 0x4 - core index']
  #allocation1 [shape = 'u32[144,128]{1,0:T(1,128)}', space=vmem, size = 0x12000, scoped, tag = 'internal scratch']
  #allocation2 [shape = 'f32[8,32]{1,0:T(8,128)}', space=vmem, size = 0x1000, scoped, tag = 'scratch operand']
  %s0 = inlined_call_operand.hbm [shape: f32[2,8,32], index: 0, kind: input, shape index: {}]
  %s1 = inlined_call_operand.hbm [shape: f32[2,8,8], index: 1, kind: input, shape index: {}]
  %s2 = inlined_call_operand.hbm [shape: f32[1,8,32], index: 2, kind: input, shape index: {}]
  %s3 = inlined_call_operand.hbm [shape: bf16[2,32,96], index: 3, kind: input, shape index: {}]
  %s4 = inlined_call_operand.hbm [shape: f32[2,1,96], index: 4, kind: input, shape index: {}]
  %s5 = inlined_call_operand.hbm [shape: bf16[2,32,32], index: 5, kind: input, shape index: {}]
  %s6 = inlined_call_operand.hbm [shape: f32[2,1,32], index: 6, kind: input, shape index: {}]
  %s7 = inlined_call_operand.hbm [shape: f32[2,1,32], index: 7, kind: input, shape index: {}]
  %s8 = inlined_call_operand.hbm [shape: f32[2,1,32], index: 8, kind: input, shape index: {}]
  %s9 = inlined_call_operand.hbm [shape: bf16[2,32,64], index: 9, kind: input, shape index: {}]
  %s10 = inlined_call_operand.hbm [shape: f32[2,1,64], index: 10, kind: input, shape index: {}]
  %s11 = inlined_call_operand.hbm [shape: bf16[2,64,32], index: 11, kind: input, shape index: {}]
  %s12 = inlined_call_operand.hbm [shape: f32[2,1,32], index: 12, kind: input, shape index: {}]
  %s13 = inlined_call_operand.hbm [shape: f32[2,1,32], index: 13, kind: input, shape index: {}]
  %s14 = inlined_call_operand.hbm [shape: f32[2,1,32], index: 14, kind: input, shape index: {}]
  %s15 = inlined_call_operand.hbm [shape: f32[2,8,32], index: 15, kind: output, shape index: {}]
  %s16 = sld [smem:[#allocation0]]
  $region157: #{transformer_encoder.1} parent=0
    _
  %s18 = ssub.s32 1, %s16
  %s19 = scalar_select 0, %s18, %s16
  $region1: #{transformer_encoder.1} parent=0
    #allocation3 [shape = 'u8[8192]{0}', space=vmem, size = 0x2000, scoped, tag = 'input window, operand 0']
    #allocation4 [shape = 's32[2]{0}', space=sflag, size = 0x8, scoped, tag = 'scoped memory for transformer_encoder.1']
    #allocation5 [shape = 's32[2]{0}', space=sflag, size = 0x8, scoped, tag = 'scoped memory for transformer_encoder.1']
    #allocation6 [shape = 'u8[8192]{0}', space=vmem, size = 0x2000, scoped, tag = 'input window, operand 1']
    #allocation7 [shape = 's32[2]{0}', space=sflag, size = 0x8, scoped, tag = 'scoped memory for transformer_encoder.1']
    #allocation8 [shape = 'u8[4096]{0}', space=vmem, size = 0x1000, scoped, tag = 'input window, operand 2, single buffered']
    #allocation9 [shape = 'u8[16384]{0}', space=vmem, size = 0x4000, scoped, tag = 'input window, operand 3']
    #allocation10 [shape = 's32[2]{0}', space=sflag, size = 0x8, scoped, tag = 'scoped memory for transformer_encoder.1']
    #allocation11 [shape = 'u8[1024]{0}', space=vmem, size = 0x400, scoped, tag = 'input window, operand 4']
    #allocation12 [shape = 'u8[16384]{0}', space=vmem, size = 0x4000, scoped, tag = 'input window, operand 5']
    #allocation13 [shape = 's32[2]{0}', space=sflag, size = 0x8, scoped, tag = 'scoped memory for transformer_encoder.1']
    #allocation14 [shape = 'u8[1024]{0}', space=vmem, size = 0x400, scoped, tag = 'input window, operand 6']
    #allocation15 [shape = 'u8[1024]{0}', space=vmem, size = 0x400, scoped, tag = 'input window, operand 7']
    #allocation16 [shape = 's32[2]{0}', space=sflag, size = 0x8, scoped, tag = 'scoped memory for transformer_encoder.1']
    #allocation17 [shape = 'u8[1024]{0}', space=vmem, size = 0x400, scoped, tag = 'input window, operand 8']
    #allocation18 [shape = 'u8[16384]{0}', space=vmem, size = 0x4000, scoped, tag = 'input window, operand 9']
    #allocation19 [shape = 's32[2]{0}', space=sflag, size = 0x8, scoped, tag = 'scoped memory for transformer_encoder.1']
    #allocation20 [shape = 'u8[1024]{0}', space=vmem, size = 0x400, scoped, tag = 'input window, operand 10']
    #allocation21 [shape = 'u8[32768]{0}', space=vmem, size = 0x8000, scoped, tag = 'input window, operand 11']
    #allocation22 [shape = 's32[2]{0}', space=sflag, size = 0x8, scoped, tag = 'scoped memory for transformer_encoder.1']
    #allocation23 [shape = 'u8[1024]{0}', space=vmem, size = 0x400, scoped, tag = 'input window, operand 12']
    #allocation24 [shape = 'u8[1024]{0}', space=vmem, size = 0x400, scoped, tag = 'input window, operand 13']
    #allocation25 [shape = 's32[2]{0}', space=sflag, size = 0x8, scoped, tag = 'scoped memory for transformer_encoder.1']
    #allocation26 [shape = 'u8[1024]{0}', space=vmem, size = 0x400, scoped, tag = 'input window, operand 14']
    #allocation27 [shape = 'u8[8192]{0}', space=vmem, size = 0x2000, scoped, tag = 'output window, operand 0']
    %20 = vsyncpa [#allocation4], 0
    %s21 = scalar_lea.sflag [#allocation4], 1
    %22 = vsyncpa %s21, 0
    %23 = vsyncpa [#allocation7], 0
    %s24 = scalar_lea.sflag [#allocation7], 1
    %25 = vsyncpa %s24, 0
    %26 = vsyncpa [#allocation10], 0
    %s27 = scalar_lea.sflag [#allocation10], 1
    %28 = vsyncpa %s27, 0
    %29 = vsyncpa [#allocation13], 0
    %s30 = scalar_lea.sflag [#allocation13], 1
    %31 = vsyncpa %s30, 0
    %32 = vsyncpa [#allocation16], 0
    %s33 = scalar_lea.sflag [#allocation16], 1
    %34 = vsyncpa %s33, 0
    %35 = vsyncpa [#allocation19], 0
    %s36 = scalar_lea.sflag [#allocation19], 1
    %37 = vsyncpa %s36, 0
    %38 = vsyncpa [#allocation22], 0
    %s39 = scalar_lea.sflag [#allocation22], 1
    %40 = vsyncpa %s39, 0
    %41 = vsyncpa [#allocation25], 0
    %s42 = scalar_lea.sflag [#allocation25], 1
    %43 = vsyncpa %s42, 0
    %44 = vsyncpa [#allocation5], 0
    %s45 = scalar_lea.sflag [#allocation5], 1
    %46 = vsyncpa %s45, 0
    loop: start=0, step=1, limit=6
    $region2: #{transformer_encoder.1} parent=1 // loop_pre_header
      _
    $region3: #{transformer_encoder.1} parent=1 // loop_header
      %s48 = sphi 0, %s52
      %p49 = scmp.ge.s32.totalorder %s48, 6
      %s55 = sphi 0, %s67
      %s56 = sphi 0, %s63
      %s57 = sphi 0, %s55
      %s58 = sphi 0, %s56
      %s59 = sphi 0, %s57
      %s60 = sphi 0, %s58
      %s70 = sphi 0, %s72
      %s73 = sphi 0, %s70
      %s74 = sphi 0, %s73
      %s90 = sphi 0, %s74
      %s96 = sphi 0, %s98
      %s99 = sphi 0, %s96
      %s100 = sphi 0, %s99
      %s116 = sphi 0, %s100
      %s120 = sphi 0, %s120
      %s122 = sphi 0, %s120
      %s123 = sphi 0, %s122
      %s137 = sphi 0, %s123
      %s143 = sphi 0, %s145
      %s146 = sphi 0, %s143
      %s147 = sphi 0, %s146
      %s163 = sphi 0, %s147
      %s169 = sphi 0, %s171
      %s172 = sphi 0, %s169
      %s173 = sphi 0, %s172
      %s189 = sphi 0, %s173
      %s195 = sphi 0, %s197
      %s198 = sphi 0, %s195
      %s199 = sphi 0, %s198
      %s215 = sphi 0, %s199
      %s221 = sphi 0, %s223
      %s224 = sphi 0, %s221
      %s225 = sphi 0, %s224
      %s241 = sphi 0, %s225
      %s247 = sphi 0, %s249
      %s250 = sphi 0, %s247
      %s251 = sphi 0, %s250
      %s267 = sphi 0, %s251
      %s273 = sphi 0, %s275
      %s276 = sphi 0, %s273
      %s277 = sphi 0, %s276
      %s293 = sphi 0, %s277
      %s299 = sphi 0, %s301
      %s302 = sphi 0, %s299
      %s303 = sphi 0, %s302
      %s319 = sphi 0, %s303
      %s325 = sphi 0, %s327
      %s328 = sphi 0, %s325
      %s329 = sphi 0, %s328
      %s345 = sphi 0, %s329
      %s351 = sphi 0, %s353
      %s354 = sphi 0, %s351
      %s355 = sphi 0, %s354
      %s371 = sphi 0, %s355
      %s377 = sphi 0, %s379
      %s380 = sphi 0, %s377
      %s381 = sphi 0, %s380
      %s397 = sphi 0, %s381
      %s403 = sphi 0, %s405
      %s406 = sphi 0, %s403
      %s407 = sphi 0, %s406
      %s423 = sphi 0, %s407
      %s429 = sphi 0, %s431
      %s432 = sphi 0, %s429
      %s433 = sphi 0, %s432
      %s449 = sphi 0, %s433
      %s455 = sphi 0, %s457
      %s458 = sphi 0, %s455
      %s459 = sphi 0, %s458
      %s475 = sphi 0, %s459
    $region4: #{transformer_encoder.1} parent=1 // loop_header_branch
      %51 = sbr.rel (%p49) target = $region8
    $region5: #{transformer_encoder.1} parent=1 // loop_body
      %s53 = ssub.s32 %s48, 1
      %s54 = ssub.s32 %s48, 2
      %s61 = sadd.s32 1, %s56
      %p62 = scmp.ge.s32.totalorder %s61, 2
      %s63 = scalar_select %p62, 0, %s61
      %s64 = sadd.s32 1, %s55
      %s65 = scalar_select %p62, %s64, %s55
      %p66 = scmp.ge.s32.totalorder %s65, 2
      %s67 = scalar_select %p66, 0, %s65
      %s68 = ssub.s32 %s55, %s67
      %p69 = scmp.eq.s32.totalorder %s68, 0
      %s71 = sadd.s32 %s70, 1
      %s72 = scalar_select %p69, %s70, %s71
      %p75 = pneg %p69
      %p76 = scmp.eq.s32.totalorder %s48, 3
      %p77 = por %p75, %p76
      %p78 = scmp.ne.s32.totalorder %s70, %s73
      %p79 = scmp.eq.s32.totalorder %s48, 0
      %p80 = por %p78, %p79
      %p81 = scmp.ne.s32.totalorder %s70, %s73
      %p82 = scmp.eq.s32.totalorder %s53, 3
      %p83 = por %p81, %p82
      %p84 = scmp.ne.s32.totalorder %s73, %s74
      %p85 = scmp.eq.s32.totalorder %s53, 0
      %p86 = por %p84, %p85
      %p87 = scmp.ne.s32.totalorder %s73, %s74
      %p88 = scmp.eq.s32.totalorder %s54, 3
      %p89 = por %p87, %p88
      %p91 = scmp.ne.s32.totalorder %s74, %s90
      %p92 = scmp.eq.s32.totalorder %s54, 0
      %p93 = por %p91, %p92
      %s94 = ssub.s32 %s55, %s67
      %p95 = scmp.eq.s32.totalorder %s94, 0
      %s97 = sadd.s32 %s96, 1
      %s98 = scalar_select %p95, %s96, %s97
      %p101 = pneg %p95
      %p102 = scmp.eq.s32.totalorder %s48, 3
      %p103 = por %p101, %p102
      %p104 = scmp.ne.s32.totalorder %s96, %s99
      %p105 = scmp.eq.s32.totalorder %s48, 0
      %p106 = por %p104, %p105
      %p107 = scmp.ne.s32.totalorder %s96, %s99
      %p108 = scmp.eq.s32.totalorder %s53, 3
      %p109 = por %p107, %p108
      %p110 = scmp.ne.s32.totalorder %s99, %s100
      %p111 = scmp.eq.s32.totalorder %s53, 0
      %p112 = por %p110, %p111
      %p113 = scmp.ne.s32.totalorder %s99, %s100
      %p114 = scmp.eq.s32.totalorder %s54, 3
      %p115 = por %p113, %p114
      %p117 = scmp.ne.s32.totalorder %s100, %s116
      %p118 = scmp.eq.s32.totalorder %s54, 0
      %p119 = por %p117, %p118
      %s121 = sadd.s32 %s120, 1
      %p124 = scmp.eq.s32.totalorder %s48, 3
      %p125 = scmp.ne.s32.totalorder %s120, %s122
      %p126 = scmp.eq.s32.totalorder %s48, 0
      %p127 = por %p125, %p126
      %p128 = scmp.ne.s32.totalorder %s120, %s122
      %p129 = scmp.eq.s32.totalorder %s53, 3
      %p130 = por %p128, %p129
      %p131 = scmp.ne.s32.totalorder %s122, %s123
      %p132 = scmp.eq.s32.totalorder %s53, 0
      %p133 = por %p131, %p132
      %p134 = scmp.ne.s32.totalorder %s122, %s123
      %p135 = scmp.eq.s32.totalorder %s54, 3
      %p136 = por %p134, %p135
      %p138 = scmp.ne.s32.totalorder %s123, %s137
      %p139 = scmp.eq.s32.totalorder %s54, 0
      %p140 = por %p138, %p139
      %s141 = ssub.s32 %s56, %s63
      %p142 = scmp.eq.s32.totalorder %s141, 0
      %s144 = sadd.s32 %s143, 1
      %s145 = scalar_select %p142, %s143, %s144
      %p148 = pneg %p142
      %p149 = scmp.eq.s32.totalorder %s48, 3
      %p150 = por %p148, %p149
      %p151 = scmp.ne.s32.totalorder %s143, %s146
      %p152 = scmp.eq.s32.totalorder %s48, 0
      %p153 = por %p151, %p152
      %p154 = scmp.ne.s32.totalorder %s143, %s146
      %p155 = scmp.eq.s32.totalorder %s53, 3
      %p156 = por %p154, %p155
      %p157 = scmp.ne.s32.totalorder %s146, %s147
      %p158 = scmp.eq.s32.totalorder %s53, 0
      %p159 = por %p157, %p158
      %p160 = scmp.ne.s32.totalorder %s146, %s147
      %p161 = scmp.eq.s32.totalorder %s54, 3
      %p162 = por %p160, %p161
      %p164 = scmp.ne.s32.totalorder %s147, %s163
      %p165 = scmp.eq.s32.totalorder %s54, 0
      %p166 = por %p164, %p165
      %s167 = ssub.s32 %s56, %s63
      %p168 = scmp.eq.s32.totalorder %s167, 0
      %s170 = sadd.s32 %s169, 1
      %s171 = scalar_select %p168, %s169, %s170
      %p174 = pneg %p168
      %p175 = scmp.eq.s32.totalorder %s48, 3
      %p176 = por %p174, %p175
      %p177 = scmp.ne.s32.totalorder %s169, %s172
      %p178 = scmp.eq.s32.totalorder %s48, 0
      %p179 = por %p177, %p178
      %p180 = scmp.ne.s32.totalorder %s169, %s172
      %p181 = scmp.eq.s32.totalorder %s53, 3
      %p182 = por %p180, %p181
      %p183 = scmp.ne.s32.totalorder %s172, %s173
      %p184 = scmp.eq.s32.totalorder %s53, 0
      %p185 = por %p183, %p184
      %p186 = scmp.ne.s32.totalorder %s172, %s173
      %p187 = scmp.eq.s32.totalorder %s54, 3
      %p188 = por %p186, %p187
      %p190 = scmp.ne.s32.totalorder %s173, %s189
      %p191 = scmp.eq.s32.totalorder %s54, 0
      %p192 = por %p190, %p191
      %s193 = ssub.s32 %s56, %s63
      %p194 = scmp.eq.s32.totalorder %s193, 0
      %s196 = sadd.s32 %s195, 1
      %s197 = scalar_select %p194, %s195, %s196
      %p200 = pneg %p194
      %p201 = scmp.eq.s32.totalorder %s48, 3
      %p202 = por %p200, %p201
      %p203 = scmp.ne.s32.totalorder %s195, %s198
      %p204 = scmp.eq.s32.totalorder %s48, 0
      %p205 = por %p203, %p204
      %p206 = scmp.ne.s32.totalorder %s195, %s198
      %p207 = scmp.eq.s32.totalorder %s53, 3
      %p208 = por %p206, %p207
      %p209 = scmp.ne.s32.totalorder %s198, %s199
      %p210 = scmp.eq.s32.totalorder %s53, 0
      %p211 = por %p209, %p210
      %p212 = scmp.ne.s32.totalorder %s198, %s199
      %p213 = scmp.eq.s32.totalorder %s54, 3
      %p214 = por %p212, %p213
      %p216 = scmp.ne.s32.totalorder %s199, %s215
      %p217 = scmp.eq.s32.totalorder %s54, 0
      %p218 = por %p216, %p217
      %s219 = ssub.s32 %s56, %s63
      %p220 = scmp.eq.s32.totalorder %s219, 0
      %s222 = sadd.s32 %s221, 1
      %s223 = scalar_select %p220, %s221, %s222
      %p226 = pneg %p220
      %p227 = scmp.eq.s32.totalorder %s48, 3
      %p228 = por %p226, %p227
      %p229 = scmp.ne.s32.totalorder %s221, %s224
      %p230 = scmp.eq.s32.totalorder %s48, 0
      %p231 = por %p229, %p230
      %p232 = scmp.ne.s32.totalorder %s221, %s224
      %p233 = scmp.eq.s32.totalorder %s53, 3
      %p234 = por %p232, %p233
      %p235 = scmp.ne.s32.totalorder %s224, %s225
      %p236 = scmp.eq.s32.totalorder %s53, 0
      %p237 = por %p235, %p236
      %p238 = scmp.ne.s32.totalorder %s224, %s225
      %p239 = scmp.eq.s32.totalorder %s54, 3
      %p240 = por %p238, %p239
      %p242 = scmp.ne.s32.totalorder %s225, %s241
      %p243 = scmp.eq.s32.totalorder %s54, 0
      %p244 = por %p242, %p243
      %s245 = ssub.s32 %s56, %s63
      %p246 = scmp.eq.s32.totalorder %s245, 0
      %s248 = sadd.s32 %s247, 1
      %s249 = scalar_select %p246, %s247, %s248
      %p252 = pneg %p246
      %p253 = scmp.eq.s32.totalorder %s48, 3
      %p254 = por %p252, %p253
      %p255 = scmp.ne.s32.totalorder %s247, %s250
      %p256 = scmp.eq.s32.totalorder %s48, 0
      %p257 = por %p255, %p256
      %p258 = scmp.ne.s32.totalorder %s247, %s250
      %p259 = scmp.eq.s32.totalorder %s53, 3
      %p260 = por %p258, %p259
      %p261 = scmp.ne.s32.totalorder %s250, %s251
      %p262 = scmp.eq.s32.totalorder %s53, 0
      %p263 = por %p261, %p262
      %p264 = scmp.ne.s32.totalorder %s250, %s251
      %p265 = scmp.eq.s32.totalorder %s54, 3
      %p266 = por %p264, %p265
      %p268 = scmp.ne.s32.totalorder %s251, %s267
      %p269 = scmp.eq.s32.totalorder %s54, 0
      %p270 = por %p268, %p269
      %s271 = ssub.s32 %s56, %s63
      %p272 = scmp.eq.s32.totalorder %s271, 0
      %s274 = sadd.s32 %s273, 1
      %s275 = scalar_select %p272, %s273, %s274
      %p278 = pneg %p272
      %p279 = scmp.eq.s32.totalorder %s48, 3
      %p280 = por %p278, %p279
      %p281 = scmp.ne.s32.totalorder %s273, %s276
      %p282 = scmp.eq.s32.totalorder %s48, 0
      %p283 = por %p281, %p282
      %p284 = scmp.ne.s32.totalorder %s273, %s276
      %p285 = scmp.eq.s32.totalorder %s53, 3
      %p286 = por %p284, %p285
      %p287 = scmp.ne.s32.totalorder %s276, %s277
      %p288 = scmp.eq.s32.totalorder %s53, 0
      %p289 = por %p287, %p288
      %p290 = scmp.ne.s32.totalorder %s276, %s277
      %p291 = scmp.eq.s32.totalorder %s54, 3
      %p292 = por %p290, %p291
      %p294 = scmp.ne.s32.totalorder %s277, %s293
      %p295 = scmp.eq.s32.totalorder %s54, 0
      %p296 = por %p294, %p295
      %s297 = ssub.s32 %s56, %s63
      %p298 = scmp.eq.s32.totalorder %s297, 0
      %s300 = sadd.s32 %s299, 1
      %s301 = scalar_select %p298, %s299, %s300
      %p304 = pneg %p298
      %p305 = scmp.eq.s32.totalorder %s48, 3
      %p306 = por %p304, %p305
      %p307 = scmp.ne.s32.totalorder %s299, %s302
      %p308 = scmp.eq.s32.totalorder %s48, 0
      %p309 = por %p307, %p308
      %p310 = scmp.ne.s32.totalorder %s299, %s302
      %p311 = scmp.eq.s32.totalorder %s53, 3
      %p312 = por %p310, %p311
      %p313 = scmp.ne.s32.totalorder %s302, %s303
      %p314 = scmp.eq.s32.totalorder %s53, 0
      %p315 = por %p313, %p314
      %p316 = scmp.ne.s32.totalorder %s302, %s303
      %p317 = scmp.eq.s32.totalorder %s54, 3
      %p318 = por %p316, %p317
      %p320 = scmp.ne.s32.totalorder %s303, %s319
      %p321 = scmp.eq.s32.totalorder %s54, 0
      %p322 = por %p320, %p321
      %s323 = ssub.s32 %s56, %s63
      %p324 = scmp.eq.s32.totalorder %s323, 0
      %s326 = sadd.s32 %s325, 1
      %s327 = scalar_select %p324, %s325, %s326
      %p330 = pneg %p324
      %p331 = scmp.eq.s32.totalorder %s48, 3
      %p332 = por %p330, %p331
      %p333 = scmp.ne.s32.totalorder %s325, %s328
      %p334 = scmp.eq.s32.totalorder %s48, 0
      %p335 = por %p333, %p334
      %p336 = scmp.ne.s32.totalorder %s325, %s328
      %p337 = scmp.eq.s32.totalorder %s53, 3
      %p338 = por %p336, %p337
      %p339 = scmp.ne.s32.totalorder %s328, %s329
      %p340 = scmp.eq.s32.totalorder %s53, 0
      %p341 = por %p339, %p340
      %p342 = scmp.ne.s32.totalorder %s328, %s329
      %p343 = scmp.eq.s32.totalorder %s54, 3
      %p344 = por %p342, %p343
      %p346 = scmp.ne.s32.totalorder %s329, %s345
      %p347 = scmp.eq.s32.totalorder %s54, 0
      %p348 = por %p346, %p347
      %s349 = ssub.s32 %s56, %s63
      %p350 = scmp.eq.s32.totalorder %s349, 0
      %s352 = sadd.s32 %s351, 1
      %s353 = scalar_select %p350, %s351, %s352
      %p356 = pneg %p350
      %p357 = scmp.eq.s32.totalorder %s48, 3
      %p358 = por %p356, %p357
      %p359 = scmp.ne.s32.totalorder %s351, %s354
      %p360 = scmp.eq.s32.totalorder %s48, 0
      %p361 = por %p359, %p360
      %p362 = scmp.ne.s32.totalorder %s351, %s354
      %p363 = scmp.eq.s32.totalorder %s53, 3
      %p364 = por %p362, %p363
      %p365 = scmp.ne.s32.totalorder %s354, %s355
      %p366 = scmp.eq.s32.totalorder %s53, 0
      %p367 = por %p365, %p366
      %p368 = scmp.ne.s32.totalorder %s354, %s355
      %p369 = scmp.eq.s32.totalorder %s54, 3
      %p370 = por %p368, %p369
      %p372 = scmp.ne.s32.totalorder %s355, %s371
      %p373 = scmp.eq.s32.totalorder %s54, 0
      %p374 = por %p372, %p373
      %s375 = ssub.s32 %s56, %s63
      %p376 = scmp.eq.s32.totalorder %s375, 0
      %s378 = sadd.s32 %s377, 1
      %s379 = scalar_select %p376, %s377, %s378
      %p382 = pneg %p376
      %p383 = scmp.eq.s32.totalorder %s48, 3
      %p384 = por %p382, %p383
      %p385 = scmp.ne.s32.totalorder %s377, %s380
      %p386 = scmp.eq.s32.totalorder %s48, 0
      %p387 = por %p385, %p386
      %p388 = scmp.ne.s32.totalorder %s377, %s380
      %p389 = scmp.eq.s32.totalorder %s53, 3
      %p390 = por %p388, %p389
      %p391 = scmp.ne.s32.totalorder %s380, %s381
      %p392 = scmp.eq.s32.totalorder %s53, 0
      %p393 = por %p391, %p392
      %p394 = scmp.ne.s32.totalorder %s380, %s381
      %p395 = scmp.eq.s32.totalorder %s54, 3
      %p396 = por %p394, %p395
      %p398 = scmp.ne.s32.totalorder %s381, %s397
      %p399 = scmp.eq.s32.totalorder %s54, 0
      %p400 = por %p398, %p399
      %s401 = ssub.s32 %s56, %s63
      %p402 = scmp.eq.s32.totalorder %s401, 0
      %s404 = sadd.s32 %s403, 1
      %s405 = scalar_select %p402, %s403, %s404
      %p408 = pneg %p402
      %p409 = scmp.eq.s32.totalorder %s48, 3
      %p410 = por %p408, %p409
      %p411 = scmp.ne.s32.totalorder %s403, %s406
      %p412 = scmp.eq.s32.totalorder %s48, 0
      %p413 = por %p411, %p412
      %p414 = scmp.ne.s32.totalorder %s403, %s406
      %p415 = scmp.eq.s32.totalorder %s53, 3
      %p416 = por %p414, %p415
      %p417 = scmp.ne.s32.totalorder %s406, %s407
      %p418 = scmp.eq.s32.totalorder %s53, 0
      %p419 = por %p417, %p418
      %p420 = scmp.ne.s32.totalorder %s406, %s407
      %p421 = scmp.eq.s32.totalorder %s54, 3
      %p422 = por %p420, %p421
      %p424 = scmp.ne.s32.totalorder %s407, %s423
      %p425 = scmp.eq.s32.totalorder %s54, 0
      %p426 = por %p424, %p425
      %s427 = ssub.s32 %s56, %s63
      %p428 = scmp.eq.s32.totalorder %s427, 0
      %s430 = sadd.s32 %s429, 1
      %s431 = scalar_select %p428, %s429, %s430
      %p434 = pneg %p428
      %p435 = scmp.eq.s32.totalorder %s48, 3
      %p436 = por %p434, %p435
      %p437 = scmp.ne.s32.totalorder %s429, %s432
      %p438 = scmp.eq.s32.totalorder %s48, 0
      %p439 = por %p437, %p438
      %p440 = scmp.ne.s32.totalorder %s429, %s432
      %p441 = scmp.eq.s32.totalorder %s53, 3
      %p442 = por %p440, %p441
      %p443 = scmp.ne.s32.totalorder %s432, %s433
      %p444 = scmp.eq.s32.totalorder %s53, 0
      %p445 = por %p443, %p444
      %p446 = scmp.ne.s32.totalorder %s432, %s433
      %p447 = scmp.eq.s32.totalorder %s54, 3
      %p448 = por %p446, %p447
      %p450 = scmp.ne.s32.totalorder %s433, %s449
      %p451 = scmp.eq.s32.totalorder %s54, 0
      %p452 = por %p450, %p451
      %s453 = ssub.s32 %s55, %s67
      %p454 = scmp.eq.s32.totalorder %s453, 0
      %s456 = sadd.s32 %s455, 1
      %s457 = scalar_select %p454, %s455, %s456
      %p460 = pneg %p454
      %p461 = scmp.eq.s32.totalorder %s48, 3
      %p462 = por %p460, %p461
      %p463 = scmp.ne.s32.totalorder %s455, %s458
      %p464 = scmp.eq.s32.totalorder %s48, 0
      %p465 = por %p463, %p464
      %p466 = scmp.ne.s32.totalorder %s455, %s458
      %p467 = scmp.eq.s32.totalorder %s53, 3
      %p468 = por %p466, %p467
      %p469 = scmp.ne.s32.totalorder %s458, %s459
      %p470 = scmp.eq.s32.totalorder %s53, 0
      %p471 = por %p469, %p470
      %p472 = scmp.ne.s32.totalorder %s458, %s459
      %p473 = scmp.eq.s32.totalorder %s54, 3
      %p474 = por %p472, %p473
      %p476 = scmp.ne.s32.totalorder %s459, %s475
      %p477 = scmp.eq.s32.totalorder %s54, 0
      %p478 = por %p476, %p477
      %p479 = scmp.le.s32.totalorder 1, %s48
      %p480 = scmp.lt.s32.totalorder %s48, 5
      %p481 = pnand %p479, %p480
      %p482 = pneg %p481
      // Predicated region
      $region9: #{transformer_encoder.1} parent=5 // pred_check
        _
      $region10: #{transformer_encoder.1} parent=5 // pred_check_branch
        %484 = sbr.rel (%p481) target = $region12
      $region11: #{transformer_encoder.1} parent=5 // pred_region
        %s485 = ssub.s32 %s48, 1
        // Predicated region
        $region13: #{transformer_encoder.1} parent=11 // pred_check
          %p486 = pneg %p133
        $region14: #{transformer_encoder.1} parent=11 // pred_check_branch
          %488 = sbr.rel (%p486) target = $region16
        $region15: #{transformer_encoder.1} parent=11 // pred_region
          %s490 = ssub.s32 128, 128
          %491 = vsyncadd [#allocation7], %s490
          %s493 = sshll.u32 [#allocation8], 4
          %s494 = int_to_ptr.vmem [resolvable:$true] %s493
          %496 = dma.hbm_to_vmem [thread:$0]  %s2, 128, %s494, [#allocation7]
        $region16: #{transformer_encoder.1} parent=11 // pred_fallthru
          _
      $region12: #{transformer_encoder.1} parent=5 // pred_fallthru
        _
      %p497 = scmp.lt.s32.totalorder %s48, 4
      // Predicated region
      $region17: #{transformer_encoder.1} parent=5 // pred_check
        %p498 = pneg %p497
      $region18: #{transformer_encoder.1} parent=5 // pred_check_branch
        %500 = sbr.rel (%p498) target = $region20
      $region19: #{transformer_encoder.1} parent=5 // pred_region
        // Predicated region
        $region21: #{transformer_encoder.1} parent=19 // pred_check
          %p501 = pneg %p80
        $region22: #{transformer_encoder.1} parent=19 // pred_check_branch
          %503 = sbr.rel (%p501) target = $region24
        $region23: #{transformer_encoder.1} parent=19 // pred_region
          %s504 = sand.u32 %s70, 1
          %s505 = scalar_lea.sflag [#allocation4], %s504
          %s506 = sand.u32 %s70, 1
          %s507 = smul.addr %s506, 8
          %s508 = scalar_lea.vmem [#allocation3], %s507
          %s510 = ssub.s32 128, 128
          %511 = vsyncadd %s505, %s510
          %s512 = smul.addr %s55, 128
          %s513 = scalar_lea.hbm %s0, %s512
          %s515 = sshll.u32 %s508, 4
          %s516 = int_to_ptr.vmem [resolvable:$true] %s515
          %518 = dma.hbm_to_vmem [thread:$0]  %s513, 128, %s516, %s505
        $region24: #{transformer_encoder.1} parent=19 // pred_fallthru
          _
        // Predicated region
        $region25: #{transformer_encoder.1} parent=19 // pred_check
          %p519 = pneg %p106
        $region26: #{transformer_encoder.1} parent=19 // pred_check_branch
          %521 = sbr.rel (%p519) target = $region28
        $region27: #{transformer_encoder.1} parent=19 // pred_region
          %s522 = sand.u32 %s48, 1
          %s523 = scalar_lea.sflag [#allocation7], %s522
          %s524 = sand.u32 %s96, 1
          %s525 = smul.addr %s524, 8
          %s526 = scalar_lea.vmem [#allocation6], %s525
          %s528 = ssub.s32 128, 128
          %529 = vsyncadd %s523, %s528
          %s530 = smul.addr %s55, 128
          %s531 = scalar_lea.hbm %s1, %s530
          %s533 = sshll.u32 %s526, 4
          %s534 = int_to_ptr.vmem [resolvable:$true] %s533
          %536 = dma.hbm_to_vmem [thread:$0]  %s531, 128, %s534, %s523
        $region28: #{transformer_encoder.1} parent=19 // pred_fallthru
          _
        // Predicated region
        $region29: #{transformer_encoder.1} parent=19 // pred_check
          %p537 = pneg %p153
        $region30: #{transformer_encoder.1} parent=19 // pred_check_branch
          %539 = sbr.rel (%p537) target = $region32
        $region31: #{transformer_encoder.1} parent=19 // pred_region
          %s540 = sand.u32 %s48, 1
          %s541 = scalar_lea.sflag [#allocation10], %s540
          %s542 = sand.u32 %s143, 1
          %s543 = smul.addr %s542, 16
          %s544 = scalar_lea.vmem [#allocation9], %s543
          %s546 = ssub.s32 256, 256
          %547 = vsyncadd %s541, %s546
          %s548 = smul.addr %s56, 4
          %s549 = smul.addr %s548, 64
          %s550 = scalar_lea.hbm %s3, %s549
          %s551 = sshll.u32 %s544, 4
          %s552 = int_to_ptr.vmem [resolvable:$true] %s551
          %557 = dma.hbm_to_vmem [thread:$0]  %s550, 256, %s552, %s541, 64, 64, 4
        $region32: #{transformer_encoder.1} parent=19 // pred_fallthru
          _
        // Predicated region
        $region33: #{transformer_encoder.1} parent=19 // pred_check
          %p558 = pneg %p179
        $region34: #{transformer_encoder.1} parent=19 // pred_check_branch
          %560 = sbr.rel (%p558) target = $region36
        $region35: #{transformer_encoder.1} parent=19 // pred_region
          %s561 = sand.u32 %s48, 1
          %s562 = scalar_lea.sflag [#allocation10], %s561
          %s563 = sand.u32 %s169, 1
          %s564 = scalar_lea.vmem [#allocation11], %s563
          %s566 = ssub.s32 16, 16
          %567 = vsyncadd %s562, %s566
          %s568 = smul.addr %s56, 16
          %s569 = scalar_lea.hbm %s4, %s568
          %s571 = sshll.u32 %s564, 4
          %s572 = int_to_ptr.vmem [resolvable:$true] %s571
          %574 = dma.hbm_to_vmem [thread:$0]  %s569, 16, %s572, %s562
        $region36: #{transformer_encoder.1} parent=19 // pred_fallthru
          _
        // Predicated region
        $region37: #{transformer_encoder.1} parent=19 // pred_check
          %p575 = pneg %p205
        $region38: #{transformer_encoder.1} parent=19 // pred_check_branch
          %577 = sbr.rel (%p575) target = $region40
        $region39: #{transformer_encoder.1} parent=19 // pred_region
          %s578 = sand.u32 %s48, 1
          %s579 = scalar_lea.sflag [#allocation13], %s578
          %s580 = sand.u32 %s195, 1
          %s581 = smul.addr %s580, 16
          %s582 = scalar_lea.vmem [#allocation12], %s581
          %s584 = ssub.s32 256, 256
          %585 = vsyncadd %s579, %s584
          %s586 = smul.addr %s56, 4
          %s587 = smul.addr %s586, 64
          %s588 = scalar_lea.hbm %s5, %s587
          %s589 = sshll.u32 %s582, 4
          %s590 = int_to_ptr.vmem [resolvable:$true] %s589
          %595 = dma.hbm_to_vmem [thread:$0]  %s588, 256, %s590, %s579, 64, 64, 4
        $region40: #{transformer_encoder.1} parent=19 // pred_fallthru
          _
        // Predicated region
        $region41: #{transformer_encoder.1} parent=19 // pred_check
          %p596 = pneg %p231
        $region42: #{transformer_encoder.1} parent=19 // pred_check_branch
          %598 = sbr.rel (%p596) target = $region44
        $region43: #{transformer_encoder.1} parent=19 // pred_region
          %s599 = sand.u32 %s48, 1
          %s600 = scalar_lea.sflag [#allocation13], %s599
          %s601 = sand.u32 %s221, 1
          %s602 = scalar_lea.vmem [#allocation14], %s601
          %s604 = ssub.s32 16, 16
          %605 = vsyncadd %s600, %s604
          %s606 = smul.addr %s56, 16
          %s607 = scalar_lea.hbm %s6, %s606
          %s609 = sshll.u32 %s602, 4
          %s610 = int_to_ptr.vmem [resolvable:$true] %s609
          %612 = dma.hbm_to_vmem [thread:$0]  %s607, 16, %s610, %s600
        $region44: #{transformer_encoder.1} parent=19 // pred_fallthru
          _
        // Predicated region
        $region45: #{transformer_encoder.1} parent=19 // pred_check
          %p613 = pneg %p257
        $region46: #{transformer_encoder.1} parent=19 // pred_check_branch
          %615 = sbr.rel (%p613) target = $region48
        $region47: #{transformer_encoder.1} parent=19 // pred_region
          %s616 = sand.u32 %s48, 1
          %s617 = scalar_lea.sflag [#allocation16], %s616
          %s618 = sand.u32 %s247, 1
          %s619 = scalar_lea.vmem [#allocation15], %s618
          %s621 = ssub.s32 16, 16
          %622 = vsyncadd %s617, %s621
          %s623 = smul.addr %s56, 16
          %s624 = scalar_lea.hbm %s7, %s623
          %s626 = sshll.u32 %s619, 4
          %s627 = int_to_ptr.vmem [resolvable:$true] %s626
          %629 = dma.hbm_to_vmem [thread:$0]  %s624, 16, %s627, %s617
        $region48: #{transformer_encoder.1} parent=19 // pred_fallthru
          _
        // Predicated region
        $region49: #{transformer_encoder.1} parent=19 // pred_check
          %p630 = pneg %p283
        $region50: #{transformer_encoder.1} parent=19 // pred_check_branch
          %632 = sbr.rel (%p630) target = $region52
        $region51: #{transformer_encoder.1} parent=19 // pred_region
          %s633 = sand.u32 %s48, 1
          %s634 = scalar_lea.sflag [#allocation16], %s633
          %s635 = sand.u32 %s273, 1
          %s636 = scalar_lea.vmem [#allocation17], %s635
          %s638 = ssub.s32 16, 16
          %639 = vsyncadd %s634, %s638
          %s640 = smul.addr %s56, 16
          %s641 = scalar_lea.hbm %s8, %s640
          %s643 = sshll.u32 %s636, 4
          %s644 = int_to_ptr.vmem [resolvable:$true] %s643
          %646 = dma.hbm_to_vmem [thread:$0]  %s641, 16, %s644, %s634
        $region52: #{transformer_encoder.1} parent=19 // pred_fallthru
          _
        // Predicated region
        $region53: #{transformer_encoder.1} parent=19 // pred_check
          %p647 = pneg %p309
        $region54: #{transformer_encoder.1} parent=19 // pred_check_branch
          %649 = sbr.rel (%p647) target = $region56
        $region55: #{transformer_encoder.1} parent=19 // pred_region
          %s650 = sand.u32 %s48, 1
          %s651 = scalar_lea.sflag [#allocation19], %s650
          %s652 = sand.u32 %s299, 1
          %s653 = smul.addr %s652, 16
          %s654 = scalar_lea.vmem [#allocation18], %s653
          %s656 = ssub.s32 256, 256
          %657 = vsyncadd %s651, %s656
          %s658 = smul.addr %s56, 4
          %s659 = smul.addr %s658, 64
          %s660 = scalar_lea.hbm %s9, %s659
          %s661 = sshll.u32 %s654, 4
          %s662 = int_to_ptr.vmem [resolvable:$true] %s661
          %667 = dma.hbm_to_vmem [thread:$0]  %s660, 256, %s662, %s651, 64, 64, 4
        $region56: #{transformer_encoder.1} parent=19 // pred_fallthru
          _
        // Predicated region
        $region57: #{transformer_encoder.1} parent=19 // pred_check
          %p668 = pneg %p335
        $region58: #{transformer_encoder.1} parent=19 // pred_check_branch
          %670 = sbr.rel (%p668) target = $region60
        $region59: #{transformer_encoder.1} parent=19 // pred_region
          %s671 = sand.u32 %s48, 1
          %s672 = scalar_lea.sflag [#allocation19], %s671
          %s673 = sand.u32 %s325, 1
          %s674 = scalar_lea.vmem [#allocation20], %s673
          %s676 = ssub.s32 16, 16
          %677 = vsyncadd %s672, %s676
          %s678 = smul.addr %s56, 16
          %s679 = scalar_lea.hbm %s10, %s678
          %s681 = sshll.u32 %s674, 4
          %s682 = int_to_ptr.vmem [resolvable:$true] %s681
          %684 = dma.hbm_to_vmem [thread:$0]  %s679, 16, %s682, %s672
        $region60: #{transformer_encoder.1} parent=19 // pred_fallthru
          _
        // Predicated region
        $region61: #{transformer_encoder.1} parent=19 // pred_check
          %p685 = pneg %p361
        $region62: #{transformer_encoder.1} parent=19 // pred_check_branch
          %687 = sbr.rel (%p685) target = $region64
        $region63: #{transformer_encoder.1} parent=19 // pred_region
          %s688 = sand.u32 %s48, 1
          %s689 = scalar_lea.sflag [#allocation22], %s688
          %s690 = sand.u32 %s351, 1
          %s691 = smul.addr %s690, 32
          %s692 = scalar_lea.vmem [#allocation21], %s691
          %s694 = ssub.s32 512, 512
          %695 = vsyncadd %s689, %s694
          %s696 = smul.addr %s56, 8
          %s697 = smul.addr %s696, 64
          %s698 = scalar_lea.hbm %s11, %s697
          %s699 = sshll.u32 %s692, 4
          %s700 = int_to_ptr.vmem [resolvable:$true] %s699
          %705 = dma.hbm_to_vmem [thread:$0]  %s698, 512, %s700, %s689, 64, 64, 4
        $region64: #{transformer_encoder.1} parent=19 // pred_fallthru
          _
        // Predicated region
        $region65: #{transformer_encoder.1} parent=19 // pred_check
          %p706 = pneg %p387
        $region66: #{transformer_encoder.1} parent=19 // pred_check_branch
          %708 = sbr.rel (%p706) target = $region68
        $region67: #{transformer_encoder.1} parent=19 // pred_region
          %s709 = sand.u32 %s48, 1
          %s710 = scalar_lea.sflag [#allocation22], %s709
          %s711 = sand.u32 %s377, 1
          %s712 = scalar_lea.vmem [#allocation23], %s711
          %s714 = ssub.s32 16, 16
          %715 = vsyncadd %s710, %s714
          %s716 = smul.addr %s56, 16
          %s717 = scalar_lea.hbm %s12, %s716
          %s719 = sshll.u32 %s712, 4
          %s720 = int_to_ptr.vmem [resolvable:$true] %s719
          %722 = dma.hbm_to_vmem [thread:$0]  %s717, 16, %s720, %s710
        $region68: #{transformer_encoder.1} parent=19 // pred_fallthru
          _
        // Predicated region
        $region69: #{transformer_encoder.1} parent=19 // pred_check
          %p723 = pneg %p413
        $region70: #{transformer_encoder.1} parent=19 // pred_check_branch
          %725 = sbr.rel (%p723) target = $region72
        $region71: #{transformer_encoder.1} parent=19 // pred_region
          %s726 = sand.u32 %s48, 1
          %s727 = scalar_lea.sflag [#allocation25], %s726
          %s728 = sand.u32 %s403, 1
          %s729 = scalar_lea.vmem [#allocation24], %s728
          %s731 = ssub.s32 16, 16
          %732 = vsyncadd %s727, %s731
          %s733 = smul.addr %s56, 16
          %s734 = scalar_lea.hbm %s13, %s733
          %s736 = sshll.u32 %s729, 4
          %s737 = int_to_ptr.vmem [resolvable:$true] %s736
          %739 = dma.hbm_to_vmem [thread:$0]  %s734, 16, %s737, %s727
        $region72: #{transformer_encoder.1} parent=19 // pred_fallthru
          _
        // Predicated region
        $region73: #{transformer_encoder.1} parent=19 // pred_check
          %p740 = pneg %p439
        $region74: #{transformer_encoder.1} parent=19 // pred_check_branch
          %742 = sbr.rel (%p740) target = $region76
        $region75: #{transformer_encoder.1} parent=19 // pred_region
          %s743 = sand.u32 %s48, 1
          %s744 = scalar_lea.sflag [#allocation25], %s743
          %s745 = sand.u32 %s429, 1
          %s746 = scalar_lea.vmem [#allocation26], %s745
          %s748 = ssub.s32 16, 16
          %749 = vsyncadd %s744, %s748
          %s750 = smul.addr %s56, 16
          %s751 = scalar_lea.hbm %s14, %s750
          %s753 = sshll.u32 %s746, 4
          %s754 = int_to_ptr.vmem [resolvable:$true] %s753
          %756 = dma.hbm_to_vmem [thread:$0]  %s751, 16, %s754, %s744
        $region76: #{transformer_encoder.1} parent=19 // pred_fallthru
          _
      $region20: #{transformer_encoder.1} parent=5 // pred_fallthru
        _
      %p757 = scmp.le.s32.totalorder 1, %s48
      %p758 = scmp.lt.s32.totalorder %s48, 5
      %p759 = pnand %p757, %p758
      %p760 = pneg %p759
      // Predicated region
      $region77: #{transformer_encoder.1} parent=5 // pred_check
        _
      $region78: #{transformer_encoder.1} parent=5 // pred_check_branch
        %762 = sbr.rel (%p759) target = $region80
      $region79: #{transformer_encoder.1} parent=5 // pred_region
        %s763 = ssub.s32 %s48, 1
        %s764 = sand.u32 %s73, 1
        %s765 = scalar_lea.sflag [#allocation4], %s764
        %s766 = sand.u32 %s73, 1
        %s767 = smul.addr %s766, 8
        %s768 = scalar_lea.vmem [#allocation3], %s767
        // Predicated region
        $region81: #{transformer_encoder.1} parent=79 // pred_check
          %p769 = pneg %p86
        $region82: #{transformer_encoder.1} parent=79 // pred_check_branch
          %771 = sbr.rel (%p769) target = $region84
        $region83: #{transformer_encoder.1} parent=79 // pred_region
          %772 = dma.done %s765, 128
        $region84: #{transformer_encoder.1} parent=79 // pred_fallthru
          _
        %s773 = sand.u32 %s53, 1
        %s774 = scalar_lea.sflag [#allocation7], %s773
        %s775 = sand.u32 %s99, 1
        %s776 = smul.addr %s775, 8
        %s777 = scalar_lea.vmem [#allocation6], %s776
        // Predicated region
        $region85: #{transformer_encoder.1} parent=79 // pred_check
          %p778 = pneg %p112
        $region86: #{transformer_encoder.1} parent=79 // pred_check_branch
          %780 = sbr.rel (%p778) target = $region88
        $region87: #{transformer_encoder.1} parent=79 // pred_region
          %781 = dma.done %s774, 128
        $region88: #{transformer_encoder.1} parent=79 // pred_fallthru
          _
        // Predicated region
        $region89: #{transformer_encoder.1} parent=79 // pred_check
          %p782 = pneg %p133
        $region90: #{transformer_encoder.1} parent=79 // pred_check_branch
          %784 = sbr.rel (%p782) target = $region92
        $region91: #{transformer_encoder.1} parent=79 // pred_region
          %785 = dma.done [#allocation7], 128
        $region92: #{transformer_encoder.1} parent=79 // pred_fallthru
          _
        %s786 = sand.u32 %s53, 1
        %s787 = scalar_lea.sflag [#allocation10], %s786
        %s788 = sand.u32 %s146, 1
        %s789 = smul.addr %s788, 16
        %s790 = scalar_lea.vmem [#allocation9], %s789
        // Predicated region
        $region93: #{transformer_encoder.1} parent=79 // pred_check
          %p791 = pneg %p159
        $region94: #{transformer_encoder.1} parent=79 // pred_check_branch
          %793 = sbr.rel (%p791) target = $region96
        $region95: #{transformer_encoder.1} parent=79 // pred_region
          %794 = dma.done %s787, 256
        $region96: #{transformer_encoder.1} parent=79 // pred_fallthru
          _
        %s795 = sand.u32 %s53, 1
        %s796 = scalar_lea.sflag [#allocation10], %s795
        %s797 = sand.u32 %s172, 1
        %s798 = scalar_lea.vmem [#allocation11], %s797
        // Predicated region
        $region97: #{transformer_encoder.1} parent=79 // pred_check
          %p799 = pneg %p185
        $region98: #{transformer_encoder.1} parent=79 // pred_check_branch
          %801 = sbr.rel (%p799) target = $region100
        $region99: #{transformer_encoder.1} parent=79 // pred_region
          %802 = dma.done %s796, 16
        $region100: #{transformer_encoder.1} parent=79 // pred_fallthru
          _
        %s803 = sand.u32 %s53, 1
        %s804 = scalar_lea.sflag [#allocation13], %s803
        %s805 = sand.u32 %s198, 1
        %s806 = smul.addr %s805, 16
        %s807 = scalar_lea.vmem [#allocation12], %s806
        // Predicated region
        $region101: #{transformer_encoder.1} parent=79 // pred_check
          %p808 = pneg %p211
        $region102: #{transformer_encoder.1} parent=79 // pred_check_branch
          %810 = sbr.rel (%p808) target = $region104
        $region103: #{transformer_encoder.1} parent=79 // pred_region
          %811 = dma.done %s804, 256
        $region104: #{transformer_encoder.1} parent=79 // pred_fallthru
          _
        %s812 = sand.u32 %s53, 1
        %s813 = scalar_lea.sflag [#allocation13], %s812
        %s814 = sand.u32 %s224, 1
        %s815 = scalar_lea.vmem [#allocation14], %s814
        // Predicated region
        $region105: #{transformer_encoder.1} parent=79 // pred_check
          %p816 = pneg %p237
        $region106: #{transformer_encoder.1} parent=79 // pred_check_branch
          %818 = sbr.rel (%p816) target = $region108
        $region107: #{transformer_encoder.1} parent=79 // pred_region
          %819 = dma.done %s813, 16
        $region108: #{transformer_encoder.1} parent=79 // pred_fallthru
          _
        %s820 = sand.u32 %s53, 1
        %s821 = scalar_lea.sflag [#allocation16], %s820
        %s822 = sand.u32 %s250, 1
        %s823 = scalar_lea.vmem [#allocation15], %s822
        // Predicated region
        $region109: #{transformer_encoder.1} parent=79 // pred_check
          %p824 = pneg %p263
        $region110: #{transformer_encoder.1} parent=79 // pred_check_branch
          %826 = sbr.rel (%p824) target = $region112
        $region111: #{transformer_encoder.1} parent=79 // pred_region
          %827 = dma.done %s821, 16
        $region112: #{transformer_encoder.1} parent=79 // pred_fallthru
          _
        %s828 = sand.u32 %s53, 1
        %s829 = scalar_lea.sflag [#allocation16], %s828
        %s830 = sand.u32 %s276, 1
        %s831 = scalar_lea.vmem [#allocation17], %s830
        // Predicated region
        $region113: #{transformer_encoder.1} parent=79 // pred_check
          %p832 = pneg %p289
        $region114: #{transformer_encoder.1} parent=79 // pred_check_branch
          %834 = sbr.rel (%p832) target = $region116
        $region115: #{transformer_encoder.1} parent=79 // pred_region
          %835 = dma.done %s829, 16
        $region116: #{transformer_encoder.1} parent=79 // pred_fallthru
          _
        %s836 = sand.u32 %s53, 1
        %s837 = scalar_lea.sflag [#allocation19], %s836
        %s838 = sand.u32 %s302, 1
        %s839 = smul.addr %s838, 16
        %s840 = scalar_lea.vmem [#allocation18], %s839
        // Predicated region
        $region117: #{transformer_encoder.1} parent=79 // pred_check
          %p841 = pneg %p315
        $region118: #{transformer_encoder.1} parent=79 // pred_check_branch
          %843 = sbr.rel (%p841) target = $region120
        $region119: #{transformer_encoder.1} parent=79 // pred_region
          %844 = dma.done %s837, 256
        $region120: #{transformer_encoder.1} parent=79 // pred_fallthru
          _
        %s845 = sand.u32 %s53, 1
        %s846 = scalar_lea.sflag [#allocation19], %s845
        %s847 = sand.u32 %s328, 1
        %s848 = scalar_lea.vmem [#allocation20], %s847
        // Predicated region
        $region121: #{transformer_encoder.1} parent=79 // pred_check
          %p849 = pneg %p341
        $region122: #{transformer_encoder.1} parent=79 // pred_check_branch
          %851 = sbr.rel (%p849) target = $region124
        $region123: #{transformer_encoder.1} parent=79 // pred_region
          %852 = dma.done %s846, 16
        $region124: #{transformer_encoder.1} parent=79 // pred_fallthru
          _
        %s853 = sand.u32 %s53, 1
        %s854 = scalar_lea.sflag [#allocation22], %s853
        %s855 = sand.u32 %s354, 1
        %s856 = smul.addr %s855, 32
        %s857 = scalar_lea.vmem [#allocation21], %s856
        // Predicated region
        $region125: #{transformer_encoder.1} parent=79 // pred_check
          %p858 = pneg %p367
        $region126: #{transformer_encoder.1} parent=79 // pred_check_branch
          %860 = sbr.rel (%p858) target = $region128
        $region127: #{transformer_encoder.1} parent=79 // pred_region
          %861 = dma.done %s854, 512
        $region128: #{transformer_encoder.1} parent=79 // pred_fallthru
          _
        %s862 = sand.u32 %s53, 1
        %s863 = scalar_lea.sflag [#allocation22], %s862
        %s864 = sand.u32 %s380, 1
        %s865 = scalar_lea.vmem [#allocation23], %s864
        // Predicated region
        $region129: #{transformer_encoder.1} parent=79 // pred_check
          %p866 = pneg %p393
        $region130: #{transformer_encoder.1} parent=79 // pred_check_branch
          %868 = sbr.rel (%p866) target = $region132
        $region131: #{transformer_encoder.1} parent=79 // pred_region
          %869 = dma.done %s863, 16
        $region132: #{transformer_encoder.1} parent=79 // pred_fallthru
          _
        %s870 = sand.u32 %s53, 1
        %s871 = scalar_lea.sflag [#allocation25], %s870
        %s872 = sand.u32 %s406, 1
        %s873 = scalar_lea.vmem [#allocation24], %s872
        // Predicated region
        $region133: #{transformer_encoder.1} parent=79 // pred_check
          %p874 = pneg %p419
        $region134: #{transformer_encoder.1} parent=79 // pred_check_branch
          %876 = sbr.rel (%p874) target = $region136
        $region135: #{transformer_encoder.1} parent=79 // pred_region
          %877 = dma.done %s871, 16
        $region136: #{transformer_encoder.1} parent=79 // pred_fallthru
          _
        %s878 = sand.u32 %s53, 1
        %s879 = scalar_lea.sflag [#allocation25], %s878
        %s880 = sand.u32 %s432, 1
        %s881 = scalar_lea.vmem [#allocation26], %s880
        // Predicated region
        $region137: #{transformer_encoder.1} parent=79 // pred_check
          %p882 = pneg %p445
        $region138: #{transformer_encoder.1} parent=79 // pred_check_branch
          %884 = sbr.rel (%p882) target = $region140
        $region139: #{transformer_encoder.1} parent=79 // pred_region
          %885 = dma.done %s879, 16
        $region140: #{transformer_encoder.1} parent=79 // pred_fallthru
          _
        %s886 = sand.u32 %s73, 1
        %s887 = scalar_lea.sflag [#allocation4], %s886
        %s888 = sand.u32 %s73, 1
        %s889 = smul.addr %s888, 8
        %s890 = scalar_lea.vmem [#allocation3], %s889
        %p891 = pneg %p86
        %p892 = pneg %p83
        %s893 = sand.u32 %s53, 1
        %s894 = scalar_lea.sflag [#allocation7], %s893
        %s895 = sand.u32 %s99, 1
        %s896 = smul.addr %s895, 8
        %s897 = scalar_lea.vmem [#allocation6], %s896
        %p898 = pneg %p112
        %p899 = pneg %p109
        %p900 = pneg %p133
        %p901 = pneg %p130
        %s902 = sand.u32 %s53, 1
        %s903 = scalar_lea.sflag [#allocation10], %s902
        %s904 = sand.u32 %s146, 1
        %s905 = smul.addr %s904, 16
        %s906 = scalar_lea.vmem [#allocation9], %s905
        %p907 = pneg %p159
        %p908 = pneg %p156
        %s909 = sand.u32 %s53, 1
        %s910 = scalar_lea.sflag [#allocation10], %s909
        %s911 = sand.u32 %s172, 1
        %s912 = scalar_lea.vmem [#allocation11], %s911
        %p913 = pneg %p185
        %p914 = pneg %p182
        %s915 = sand.u32 %s53, 1
        %s916 = scalar_lea.sflag [#allocation13], %s915
        %s917 = sand.u32 %s198, 1
        %s918 = smul.addr %s917, 16
        %s919 = scalar_lea.vmem [#allocation12], %s918
        %p920 = pneg %p211
        %p921 = pneg %p208
        %s922 = sand.u32 %s53, 1
        %s923 = scalar_lea.sflag [#allocation13], %s922
        %s924 = sand.u32 %s224, 1
        %s925 = scalar_lea.vmem [#allocation14], %s924
        %p926 = pneg %p237
        %p927 = pneg %p234
        %s928 = sand.u32 %s53, 1
        %s929 = scalar_lea.sflag [#allocation16], %s928
        %s930 = sand.u32 %s250, 1
        %s931 = scalar_lea.vmem [#allocation15], %s930
        %p932 = pneg %p263
        %p933 = pneg %p260
        %s934 = sand.u32 %s53, 1
        %s935 = scalar_lea.sflag [#allocation16], %s934
        %s936 = sand.u32 %s276, 1
        %s937 = scalar_lea.vmem [#allocation17], %s936
        %p938 = pneg %p289
        %p939 = pneg %p286
        %s940 = sand.u32 %s53, 1
        %s941 = scalar_lea.sflag [#allocation19], %s940
        %s942 = sand.u32 %s302, 1
        %s943 = smul.addr %s942, 16
        %s944 = scalar_lea.vmem [#allocation18], %s943
        %p945 = pneg %p315
        %p946 = pneg %p312
        %s947 = sand.u32 %s53, 1
        %s948 = scalar_lea.sflag [#allocation19], %s947
        %s949 = sand.u32 %s328, 1
        %s950 = scalar_lea.vmem [#allocation20], %s949
        %p951 = pneg %p341
        %p952 = pneg %p338
        %s953 = sand.u32 %s53, 1
        %s954 = scalar_lea.sflag [#allocation22], %s953
        %s955 = sand.u32 %s354, 1
        %s956 = smul.addr %s955, 32
        %s957 = scalar_lea.vmem [#allocation21], %s956
        %p958 = pneg %p367
        %p959 = pneg %p364
        %s960 = sand.u32 %s53, 1
        %s961 = scalar_lea.sflag [#allocation22], %s960
        %s962 = sand.u32 %s380, 1
        %s963 = scalar_lea.vmem [#allocation23], %s962
        %p964 = pneg %p393
        %p965 = pneg %p390
        %s966 = sand.u32 %s53, 1
        %s967 = scalar_lea.sflag [#allocation25], %s966
        %s968 = sand.u32 %s406, 1
        %s969 = scalar_lea.vmem [#allocation24], %s968
        %p970 = pneg %p419
        %p971 = pneg %p416
        %s972 = sand.u32 %s53, 1
        %s973 = scalar_lea.sflag [#allocation25], %s972
        %s974 = sand.u32 %s432, 1
        %s975 = scalar_lea.vmem [#allocation26], %s974
        %p976 = pneg %p445
        %p977 = pneg %p442
        %p978 = pneg %p471
        %p979 = pneg %p468
        %s980 = sand.u32 %s458, 1
        %s981 = scalar_lea.sflag [#allocation5], %s980
        %s982 = sand.u32 %s458, 1
        %s983 = smul.addr %s982, 8
        %s984 = scalar_lea.vmem [#allocation27], %s983
        %p986 = scmp.eq.s32.totalorder %s58, 0
        // Predicated region
        $region141: #{transformer_encoder.1} parent=79 // pred_check
          %p987 = pneg %p986
        $region142: #{transformer_encoder.1} parent=79 // pred_check_branch
          %989 = sbr.rel (%p987) target = $region144
        $region143: #{transformer_encoder.1} parent=79 // pred_region
          %v990 = vld [vmem:[%s768] sm:$0xff]
          %v991 = vld [vmem:[#allocation8] sm:$0xff]
          %v992 = vadd.f32 %v990, %v991
          %vm993 = vcmask 261120
          %994 = vst.msk [vmem:[%s984] sm:$0xff] %vm993, %v992
        $region144: #{transformer_encoder.1} parent=79 // pred_fallthru
          _
        %v995 = vld [vmem:[%s984] sm:$0xff]
        %v996 = vpack.c.bf16 %v995, %v995
        %v997 = vld [vmem:[%s790] sm:$0xf]
        %v998 = vld [vmem:[%s790 + $0x4] sm:$0xf]
        %v999 = vld [vmem:[%s790 + $0x8] sm:$0xf]
        %v1000 = vld [vmem:[%s790 + $0xc] sm:$0xf]
        %v1001 = vld [vmem:[%s798] sm:$0x1]
        %v1003 = vlaneseq
        %v1004 = vshrl.u32 %v1003, 7
        %v1005 = vsub.s32 0, %v1004
        %v1006 = vrot.slane %v1001, %v1005
        %v1012 = vunpack.c.l.b16 %v997
        %v1013 = vunpack.c.l.b16 %v998
        %v1014 = vunpack.c.l.b16 %v999
        %v1015 = vunpack.c.l.b16 %v1000
        %v1016 = vpack.c.b16 %v1013, %v1012
        %v1017 = vpack.c.b16 %v1015, %v1014
        %vm1020 = vcmask 261120
        %v1022 = vsel %vm1020, %v996, 0
        %1024 = vmatprep.subr.bf16.mxu0 0
        %1025 = vmatpush1.bf16.msra.mxu0 %v1016
        %1026 = vmatprep.subr.bf16.mxu0 0
        %1027 = vmatpush1.bf16.msra.mxu0 %v1017
        %1028 = vmatprep.subr.bf16.mxu0 0
        %1029 = vmatpush1.bf16.msra.mxu0 0
        %1030 = vmatprep.subr.bf16.mxu0 0
        %1031 = vmatpush1.bf16.msra.mxu0 0
        %1032 = vmatprep.subr.bf16.mxu0 0
        %1033 = vmatpush1.bf16.msra.mxu0 0
        %1034 = vmatprep.subr.bf16.mxu0 0
        %1035 = vmatpush1.bf16.msra.mxu0 0
        %1036 = vmatprep.subr.bf16.mxu0 0
        %1037 = vmatpush1.bf16.msra.mxu0 0
        %1038 = vmatprep.subr.bf16.mxu0 0
        %1039 = vmatpush1.bf16.msra.mxu0 0
        %1040 = vmatprep.subr.bf16.mxu0 0
        %1041 = vmatpush1.bf16.msra.mxu0 0
        %1042 = vmatprep.subr.bf16.mxu0 0
        %1043 = vmatpush1.bf16.msra.mxu0 0
        %1044 = vmatprep.subr.bf16.mxu0 0
        %1045 = vmatpush1.bf16.msra.mxu0 0
        %1046 = vmatprep.subr.bf16.mxu0 0
        %1047 = vmatpush1.bf16.msra.mxu0 0
        %1048 = vmatprep.subr.bf16.mxu0 0
        %1049 = vmatpush1.bf16.msra.mxu0 0
        %1050 = vmatprep.subr.bf16.mxu0 0
        %1051 = vmatpush1.bf16.msra.mxu0 0
        %1052 = vmatprep.subr.bf16.mxu0 0
        %1053 = vmatpush1.bf16.msra.mxu0 0
        %1054 = vmatprep.subr.bf16.mxu0 0
        %1055 = vmatpush1.bf16.msra.mxu0 0
        %1056 = vmatprep.mubr.bf16.mxu0 0
        %1057 = vmatmul.mubr.bf16.gmra.mrb[0].mxu0 %v1022
        %v1058 = vpop.f32.mrb[0].mxu0
        %v1059 = vadd.f32 %v1006, %v1058
        %v1060 = vpop.f32.mrb[0].mxu0
        %v1061 = vpop.f32.mrb[0].mxu0
        %v1062 = vpop.f32.mrb[0].mxu0
        %1063 = vdwg.mxu0
        %v1064 = vld [vmem:[%s777] sm:$0xff]
        %vm1065 = vcmp.eq.f32.partialorder %v1064, 0.0
        %v1066 = vsel %vm1065, -1e+09, 0.0
        %v1067 = vpack.c.bf16 %v1059, %v1059
        %1069 = vrot.lane.b32.xlu0 %v1067, 96
        %v1070 = vpop.permute.xlu0 %1069
        %vm1071 = vcmask 64512
        %v1073 = vsel %vm1071, %v1067, 0
        %v1076 = vsel %vm1071, %v1070, 0
        %1078 = vmatprep.subr.bf16.mxu0 0
        %1079 = vmatpush1.bf16.xpose.msra.mxu0 %v1076
        %1080 = vmatprep.subr.bf16.mxu0 0
        %1081 = vmatpush1.bf16.xpose.msra.mxu0 0
        %1082 = vmatprep.subr.bf16.mxu0 0
        %1083 = vmatpush1.bf16.xpose.msra.mxu0 0
        %1084 = vmatprep.subr.bf16.mxu0 0
        %1085 = vmatpush1.bf16.xpose.msra.mxu0 0
        %1086 = vmatprep.subr.bf16.mxu0 0
        %1087 = vmatpush1.bf16.xpose.msra.mxu0 0
        %1088 = vmatprep.subr.bf16.mxu0 0
        %1089 = vmatpush1.bf16.xpose.msra.mxu0 0
        %1090 = vmatprep.subr.bf16.mxu0 0
        %1091 = vmatpush1.bf16.xpose.msra.mxu0 0
        %1092 = vmatprep.subr.bf16.mxu0 0
        %1093 = vmatpush1.bf16.xpose.msra.mxu0 0
        %1094 = vmatprep.subr.bf16.mxu0 0
        %1095 = vmatpush1.bf16.xpose.msra.mxu0 0
        %1096 = vmatprep.subr.bf16.mxu0 0
        %1097 = vmatpush1.bf16.xpose.msra.mxu0 0
        %1098 = vmatprep.subr.bf16.mxu0 0
        %1099 = vmatpush1.bf16.xpose.msra.mxu0 0
        %1100 = vmatprep.subr.bf16.mxu0 0
        %1101 = vmatpush1.bf16.xpose.msra.mxu0 0
        %1102 = vmatprep.subr.bf16.mxu0 0
        %1103 = vmatpush1.bf16.xpose.msra.mxu0 0
        %1104 = vmatprep.subr.bf16.mxu0 0
        %1105 = vmatpush1.bf16.xpose.msra.mxu0 0
        %1106 = vmatprep.subr.bf16.mxu0 0
        %1107 = vmatpush1.bf16.xpose.msra.mxu0 0
        %1108 = vmatprep.subr.bf16.mxu0 0
        %1109 = vmatpush1.bf16.xpose.msra.mxu0 0
        %1110 = vmatprep.mubr.bf16.mxu0 0
        %1111 = vmatmul.mubr.bf16.gmra.mrb[0].mxu0 %v1073
        %v1112 = vpop.f32.mrb[0].mxu0
        %v1113 = vadd.f32 %v1066, %v1112
        %v1114 = vpop.f32.mrb[0].mxu0
        %v1115 = vpop.f32.mrb[0].mxu0
        %v1116 = vpop.f32.mrb[0].mxu0
        %1117 = vdwg.mxu0
        %v1118 = vsel %vm1071, %v1113, -inf
        %1119 = vmax.xlane.f32.xlu0 %v1118
        %v1120 = vpop.xlane.xlu0 %1119
        %v1121 = vsub.f32 %v1113, %v1120
        %v1122 = vmul.f32 %v1121, 1.442695
        %v1123 = vpow.pop %v1122
        %v1124 = vsel %vm1071, %v1123, 0.0
        %1125 = vadd.xlane.f32.xlu0 %v1124
        %v1126 = vpop.xlane.xlu0 %1125
        %v1127 = vrcp.pop %v1126
        %v1128 = vmul.f32 %v1123, %v1127
        %v1129 = vpack.c.bf16 %v1128, %v1128
        %1130 = vrot.lane.b32.xlu0 %v1067, 64
        %v1131 = vpop.permute.xlu0 %1130
        %v1133 = vsel %vm1071, %v1129, 0
        %vm1135 = vcmask 1043456
        %v1137 = vsel %vm1135, %v1131, 0
        %1139 = vmatprep.subr.bf16.mxu0 0
        %1140 = vmatpush1.bf16.msra.mxu0 %v1137
        %1141 = vmatprep.subr.bf16.mxu0 0
        %1142 = vmatpush1.bf16.msra.mxu0 0
        %1143 = vmatprep.subr.bf16.mxu0 0
        %1144 = vmatpush1.bf16.msra.mxu0 0
        %1145 = vmatprep.subr.bf16.mxu0 0
        %1146 = vmatpush1.bf16.msra.mxu0 0
        %1147 = vmatprep.subr.bf16.mxu0 0
        %1148 = vmatpush1.bf16.msra.mxu0 0
        %1149 = vmatprep.subr.bf16.mxu0 0
        %1150 = vmatpush1.bf16.msra.mxu0 0
        %1151 = vmatprep.subr.bf16.mxu0 0
        %1152 = vmatpush1.bf16.msra.mxu0 0
        %1153 = vmatprep.subr.bf16.mxu0 0
        %1154 = vmatpush1.bf16.msra.mxu0 0
        %1155 = vmatprep.subr.bf16.mxu0 0
        %1156 = vmatpush1.bf16.msra.mxu0 0
        %1157 = vmatprep.subr.bf16.mxu0 0
        %1158 = vmatpush1.bf16.msra.mxu0 0
        %1159 = vmatprep.subr.bf16.mxu0 0
        %1160 = vmatpush1.bf16.msra.mxu0 0
        %1161 = vmatprep.subr.bf16.mxu0 0
        %1162 = vmatpush1.bf16.msra.mxu0 0
        %1163 = vmatprep.subr.bf16.mxu0 0
        %1164 = vmatpush1.bf16.msra.mxu0 0
        %1165 = vmatprep.subr.bf16.mxu0 0
        %1166 = vmatpush1.bf16.msra.mxu0 0
        %1167 = vmatprep.subr.bf16.mxu0 0
        %1168 = vmatpush1.bf16.msra.mxu0 0
        %1169 = vmatprep.subr.bf16.mxu0 0
        %1170 = vmatpush1.bf16.msra.mxu0 0
        %1171 = vmatprep.mubr.bf16.mxu0 0
        %1172 = vmatmul.mubr.bf16.gmra.mrb[0].mxu0 %v1133
        %v1173 = vpop.f32.mrb[0].mxu0
        %v1174 = vadd.f32 0.0, %v1173
        %v1175 = vpop.f32.mrb[0].mxu0
        %v1176 = vpop.f32.mrb[0].mxu0
        %v1177 = vpop.f32.mrb[0].mxu0
        %1178 = vdwg.mxu0
        %1179 = vst.msk [vmem:[#allocation2] sm:$0xff] %vm1071, %v1174
        %1180 = vrot.lane.b32.xlu0 %v1067, 120
        %v1181 = vpop.permute.xlu0 %1180
        %1182 = vrot.lane.b32.xlu0 %v1067, 88
        %v1183 = vpop.permute.xlu0 %1182
        %v1185 = vsel %vm1071, %v1181, 0
        %v1188 = vsel %vm1071, %v1183, 0
        %1190 = vmatprep.subr.bf16.mxu0 0
        %1191 = vmatpush1.bf16.xpose.msra.mxu0 %v1188
        %1192 = vmatprep.subr.bf16.mxu0 0
        %1193 = vmatpush1.bf16.xpose.msra.mxu0 0
        %1194 = vmatprep.subr.bf16.mxu0 0
        %1195 = vmatpush1.bf16.xpose.msra.mxu0 0
        %1196 = vmatprep.subr.bf16.mxu0 0
        %1197 = vmatpush1.bf16.xpose.msra.mxu0 0
        %1198 = vmatprep.subr.bf16.mxu0 0
        %1199 = vmatpush1.bf16.xpose.msra.mxu0 0
        %1200 = vmatprep.subr.bf16.mxu0 0
        %1201 = vmatpush1.bf16.xpose.msra.mxu0 0
        %1202 = vmatprep.subr.bf16.mxu0 0
        %1203 = vmatpush1.bf16.xpose.msra.mxu0 0
        %1204 = vmatprep.subr.bf16.mxu0 0
        %1205 = vmatpush1.bf16.xpose.msra.mxu0 0
        %1206 = vmatprep.subr.bf16.mxu0 0
        %1207 = vmatpush1.bf16.xpose.msra.mxu0 0
        %1208 = vmatprep.subr.bf16.mxu0 0
        %1209 = vmatpush1.bf16.xpose.msra.mxu0 0
        %1210 = vmatprep.subr.bf16.mxu0 0
        %1211 = vmatpush1.bf16.xpose.msra.mxu0 0
        %1212 = vmatprep.subr.bf16.mxu0 0
        %1213 = vmatpush1.bf16.xpose.msra.mxu0 0
        %1214 = vmatprep.subr.bf16.mxu0 0
        %1215 = vmatpush1.bf16.xpose.msra.mxu0 0
        %1216 = vmatprep.subr.bf16.mxu0 0
        %1217 = vmatpush1.bf16.xpose.msra.mxu0 0
        %1218 = vmatprep.subr.bf16.mxu0 0
        %1219 = vmatpush1.bf16.xpose.msra.mxu0 0
        %1220 = vmatprep.subr.bf16.mxu0 0
        %1221 = vmatpush1.bf16.xpose.msra.mxu0 0
        %1222 = vmatprep.mubr.bf16.mxu0 0
        %1223 = vmatmul.mubr.bf16.gmra.mrb[0].mxu0 %v1185
        %v1224 = vpop.f32.mrb[0].mxu0
        %v1225 = vadd.f32 %v1066, %v1224
        %v1226 = vpop.f32.mrb[0].mxu0
        %v1227 = vpop.f32.mrb[0].mxu0
        %v1228 = vpop.f32.mrb[0].mxu0
        %1229 = vdwg.mxu0
        %v1230 = vsel %vm1071, %v1225, -inf
        %1231 = vmax.xlane.f32.xlu0 %v1230
        %v1232 = vpop.xlane.xlu0 %1231
        %v1233 = vsub.f32 %v1225, %v1232
        %v1234 = vmul.f32 %v1233, 1.442695
        %v1235 = vpow.pop %v1234
        %v1236 = vsel %vm1071, %v1235, 0.0
        %1237 = vadd.xlane.f32.xlu0 %v1236
        %v1238 = vpop.xlane.xlu0 %1237
        %v1239 = vrcp.pop %v1238
        %v1240 = vmul.f32 %v1235, %v1239
        %v1241 = vpack.c.bf16 %v1240, %v1240
        %1242 = vrot.lane.b32.xlu0 %v1067, 56
        %v1243 = vpop.permute.xlu0 %1242
        %v1245 = vsel %vm1071, %v1241, 0
        %v1248 = vsel %vm1135, %v1243, 0
        %1250 = vmatprep.subr.bf16.mxu0 0
        %1251 = vmatpush1.bf16.msra.mxu0 %v1248
        %1252 = vmatprep.subr.bf16.mxu0 0
        %1253 = vmatpush1.bf16.msra.mxu0 0
        %1254 = vmatprep.subr.bf16.mxu0 0
        %1255 = vmatpush1.bf16.msra.mxu0 0
        %1256 = vmatprep.subr.bf16.mxu0 0
        %1257 = vmatpush1.bf16.msra.mxu0 0
        %1258 = vmatprep.subr.bf16.mxu0 0
        %1259 = vmatpush1.bf16.msra.mxu0 0
        %1260 = vmatprep.subr.bf16.mxu0 0
        %1261 = vmatpush1.bf16.msra.mxu0 0
        %1262 = vmatprep.subr.bf16.mxu0 0
        %1263 = vmatpush1.bf16.msra.mxu0 0
        %1264 = vmatprep.subr.bf16.mxu0 0
        %1265 = vmatpush1.bf16.msra.mxu0 0
        %1266 = vmatprep.subr.bf16.mxu0 0
        %1267 = vmatpush1.bf16.msra.mxu0 0
        %1268 = vmatprep.subr.bf16.mxu0 0
        %1269 = vmatpush1.bf16.msra.mxu0 0
        %1270 = vmatprep.subr.bf16.mxu0 0
        %1271 = vmatpush1.bf16.msra.mxu0 0
        %1272 = vmatprep.subr.bf16.mxu0 0
        %1273 = vmatpush1.bf16.msra.mxu0 0
        %1274 = vmatprep.subr.bf16.mxu0 0
        %1275 = vmatpush1.bf16.msra.mxu0 0
        %1276 = vmatprep.subr.bf16.mxu0 0
        %1277 = vmatpush1.bf16.msra.mxu0 0
        %1278 = vmatprep.subr.bf16.mxu0 0
        %1279 = vmatpush1.bf16.msra.mxu0 0
        %1280 = vmatprep.subr.bf16.mxu0 0
        %1281 = vmatpush1.bf16.msra.mxu0 0
        %1282 = vmatprep.mubr.bf16.mxu0 0
        %1283 = vmatmul.mubr.bf16.gmra.mrb[0].mxu0 %v1245
        %v1284 = vpop.f32.mrb[0].mxu0
        %v1285 = vadd.f32 0.0, %v1284
        %v1286 = vpop.f32.mrb[0].mxu0
        %v1287 = vpop.f32.mrb[0].mxu0
        %v1288 = vpop.f32.mrb[0].mxu0
        %1289 = vdwg.mxu0
        %1291 = vrot.lane.b32.xlu0 %v1285, 8
        %v1292 = vpop.permute.xlu0 %1291
        %vm1294 = vcmask 130112
        %1295 = vst.msk [vmem:[#allocation2] sm:$0xff] %vm1294, %v1292
        %1296 = vrot.lane.b32.xlu0 %v1067, 112
        %v1297 = vpop.permute.xlu0 %1296
        %1298 = vrot.lane.b32.xlu0 %v1067, 80
        %v1299 = vpop.permute.xlu0 %1298
        %v1301 = vsel %vm1071, %v1297, 0
        %v1304 = vsel %vm1071, %v1299, 0
        %1306 = vmatprep.subr.bf16.mxu0 0
        %1307 = vmatpush1.bf16.xpose.msra.mxu0 %v1304
        %1308 = vmatprep.subr.bf16.mxu0 0
        %1309 = vmatpush1.bf16.xpose.msra.mxu0 0
        %1310 = vmatprep.subr.bf16.mxu0 0
        %1311 = vmatpush1.bf16.xpose.msra.mxu0 0
        %1312 = vmatprep.subr.bf16.mxu0 0
        %1313 = vmatpush1.bf16.xpose.msra.mxu0 0
        %1314 = vmatprep.subr.bf16.mxu0 0
        %1315 = vmatpush1.bf16.xpose.msra.mxu0 0
        %1316 = vmatprep.subr.bf16.mxu0 0
        %1317 = vmatpush1.bf16.xpose.msra.mxu0 0
        %1318 = vmatprep.subr.bf16.mxu0 0
        %1319 = vmatpush1.bf16.xpose.msra.mxu0 0
        %1320 = vmatprep.subr.bf16.mxu0 0
        %1321 = vmatpush1.bf16.xpose.msra.mxu0 0
        %1322 = vmatprep.subr.bf16.mxu0 0
        %1323 = vmatpush1.bf16.xpose.msra.mxu0 0
        %1324 = vmatprep.subr.bf16.mxu0 0
        %1325 = vmatpush1.bf16.xpose.msra.mxu0 0
        %1326 = vmatprep.subr.bf16.mxu0 0
        %1327 = vmatpush1.bf16.xpose.msra.mxu0 0
        %1328 = vmatprep.subr.bf16.mxu0 0
        %1329 = vmatpush1.bf16.xpose.msra.mxu0 0
        %1330 = vmatprep.subr.bf16.mxu0 0
        %1331 = vmatpush1.bf16.xpose.msra.mxu0 0
        %1332 = vmatprep.subr.bf16.mxu0 0
        %1333 = vmatpush1.bf16.xpose.msra.mxu0 0
        %1334 = vmatprep.subr.bf16.mxu0 0
        %1335 = vmatpush1.bf16.xpose.msra.mxu0 0
        %1336 = vmatprep.subr.bf16.mxu0 0
        %1337 = vmatpush1.bf16.xpose.msra.mxu0 0
        %1338 = vmatprep.mubr.bf16.mxu0 0
        %1339 = vmatmul.mubr.bf16.gmra.mrb[0].mxu0 %v1301
        %v1340 = vpop.f32.mrb[0].mxu0
        %v1341 = vadd.f32 %v1066, %v1340
        %v1342 = vpop.f32.mrb[0].mxu0
        %v1343 = vpop.f32.mrb[0].mxu0
        %v1344 = vpop.f32.mrb[0].mxu0
        %1345 = vdwg.mxu0
        %v1346 = vsel %vm1071, %v1341, -inf
        %1347 = vmax.xlane.f32.xlu0 %v1346
        %v1348 = vpop.xlane.xlu0 %1347
        %v1349 = vsub.f32 %v1341, %v1348
        %v1350 = vmul.f32 %v1349, 1.442695
        %v1351 = vpow.pop %v1350
        %v1352 = vsel %vm1071, %v1351, 0.0
        %1353 = vadd.xlane.f32.xlu0 %v1352
        %v1354 = vpop.xlane.xlu0 %1353
        %v1355 = vrcp.pop %v1354
        %v1356 = vmul.f32 %v1351, %v1355
        %v1357 = vpack.c.bf16 %v1356, %v1356
        %1358 = vrot.lane.b32.xlu0 %v1067, 48
        %v1359 = vpop.permute.xlu0 %1358
        %v1361 = vsel %vm1071, %v1357, 0
        %v1364 = vsel %vm1135, %v1359, 0
        %1366 = vmatprep.subr.bf16.mxu0 0
        %1367 = vmatpush1.bf16.msra.mxu0 %v1364
        %1368 = vmatprep.subr.bf16.mxu0 0
        %1369 = vmatpush1.bf16.msra.mxu0 0
        %1370 = vmatprep.subr.bf16.mxu0 0
        %1371 = vmatpush1.bf16.msra.mxu0 0
        %1372 = vmatprep.subr.bf16.mxu0 0
        %1373 = vmatpush1.bf16.msra.mxu0 0
        %1374 = vmatprep.subr.bf16.mxu0 0
        %1375 = vmatpush1.bf16.msra.mxu0 0
        %1376 = vmatprep.subr.bf16.mxu0 0
        %1377 = vmatpush1.bf16.msra.mxu0 0
        %1378 = vmatprep.subr.bf16.mxu0 0
        %1379 = vmatpush1.bf16.msra.mxu0 0
        %1380 = vmatprep.subr.bf16.mxu0 0
        %1381 = vmatpush1.bf16.msra.mxu0 0
        %1382 = vmatprep.subr.bf16.mxu0 0
        %1383 = vmatpush1.bf16.msra.mxu0 0
        %1384 = vmatprep.subr.bf16.mxu0 0
        %1385 = vmatpush1.bf16.msra.mxu0 0
        %1386 = vmatprep.subr.bf16.mxu0 0
        %1387 = vmatpush1.bf16.msra.mxu0 0
        %1388 = vmatprep.subr.bf16.mxu0 0
        %1389 = vmatpush1.bf16.msra.mxu0 0
        %1390 = vmatprep.subr.bf16.mxu0 0
        %1391 = vmatpush1.bf16.msra.mxu0 0
        %1392 = vmatprep.subr.bf16.mxu0 0
        %1393 = vmatpush1.bf16.msra.mxu0 0
        %1394 = vmatprep.subr.bf16.mxu0 0
        %1395 = vmatpush1.bf16.msra.mxu0 0
        %1396 = vmatprep.subr.bf16.mxu0 0
        %1397 = vmatpush1.bf16.msra.mxu0 0
        %1398 = vmatprep.mubr.bf16.mxu0 0
        %1399 = vmatmul.mubr.bf16.gmra.mrb[0].mxu0 %v1361
        %v1400 = vpop.f32.mrb[0].mxu0
        %v1401 = vadd.f32 0.0, %v1400
        %v1402 = vpop.f32.mrb[0].mxu0
        %v1403 = vpop.f32.mrb[0].mxu0
        %v1404 = vpop.f32.mrb[0].mxu0
        %1405 = vdwg.mxu0
        %1407 = vrot.lane.b32.xlu0 %v1401, 16
        %v1408 = vpop.permute.xlu0 %1407
        %vm1410 = vcmask 195712
        %1411 = vst.msk [vmem:[#allocation2] sm:$0xff] %vm1410, %v1408
        %1412 = vrot.lane.b32.xlu0 %v1067, 104
        %v1413 = vpop.permute.xlu0 %1412
        %1414 = vrot.lane.b32.xlu0 %v1067, 72
        %v1415 = vpop.permute.xlu0 %1414
        %v1417 = vsel %vm1071, %v1413, 0
        %v1420 = vsel %vm1071, %v1415, 0
        %1422 = vmatprep.subr.bf16.mxu0 0
        %1423 = vmatpush1.bf16.xpose.msra.mxu0 %v1420
        %1424 = vmatprep.subr.bf16.mxu0 0
        %1425 = vmatpush1.bf16.xpose.msra.mxu0 0
        %1426 = vmatprep.subr.bf16.mxu0 0
        %1427 = vmatpush1.bf16.xpose.msra.mxu0 0
        %1428 = vmatprep.subr.bf16.mxu0 0
        %1429 = vmatpush1.bf16.xpose.msra.mxu0 0
        %1430 = vmatprep.subr.bf16.mxu0 0
        %1431 = vmatpush1.bf16.xpose.msra.mxu0 0
        %1432 = vmatprep.subr.bf16.mxu0 0
        %1433 = vmatpush1.bf16.xpose.msra.mxu0 0
        %1434 = vmatprep.subr.bf16.mxu0 0
        %1435 = vmatpush1.bf16.xpose.msra.mxu0 0
        %1436 = vmatprep.subr.bf16.mxu0 0
        %1437 = vmatpush1.bf16.xpose.msra.mxu0 0
        %1438 = vmatprep.subr.bf16.mxu0 0
        %1439 = vmatpush1.bf16.xpose.msra.mxu0 0
        %1440 = vmatprep.subr.bf16.mxu0 0
        %1441 = vmatpush1.bf16.xpose.msra.mxu0 0
        %1442 = vmatprep.subr.bf16.mxu0 0
        %1443 = vmatpush1.bf16.xpose.msra.mxu0 0
        %1444 = vmatprep.subr.bf16.mxu0 0
        %1445 = vmatpush1.bf16.xpose.msra.mxu0 0
        %1446 = vmatprep.subr.bf16.mxu0 0
        %1447 = vmatpush1.bf16.xpose.msra.mxu0 0
        %1448 = vmatprep.subr.bf16.mxu0 0
        %1449 = vmatpush1.bf16.xpose.msra.mxu0 0
        %1450 = vmatprep.subr.bf16.mxu0 0
        %1451 = vmatpush1.bf16.xpose.msra.mxu0 0
        %1452 = vmatprep.subr.bf16.mxu0 0
        %1453 = vmatpush1.bf16.xpose.msra.mxu0 0
        %1454 = vmatprep.mubr.bf16.mxu0 0
        %1455 = vmatmul.mubr.bf16.gmra.mrb[0].mxu0 %v1417
        %v1456 = vpop.f32.mrb[0].mxu0
        %v1457 = vadd.f32 %v1066, %v1456
        %v1458 = vpop.f32.mrb[0].mxu0
        %v1459 = vpop.f32.mrb[0].mxu0
        %v1460 = vpop.f32.mrb[0].mxu0
        %1461 = vdwg.mxu0
        %v1462 = vsel %vm1071, %v1457, -inf
        %1463 = vmax.xlane.f32.xlu0 %v1462
        %v1464 = vpop.xlane.xlu0 %1463
        %v1465 = vsub.f32 %v1457, %v1464
        %v1466 = vmul.f32 %v1465, 1.442695
        %v1467 = vpow.pop %v1466
        %v1468 = vsel %vm1071, %v1467, 0.0
        %1469 = vadd.xlane.f32.xlu0 %v1468
        %v1470 = vpop.xlane.xlu0 %1469
        %v1471 = vrcp.pop %v1470
        %v1472 = vmul.f32 %v1467, %v1471
        %v1473 = vpack.c.bf16 %v1472, %v1472
        %1474 = vrot.lane.b32.xlu0 %v1067, 40
        %v1475 = vpop.permute.xlu0 %1474
        %v1477 = vsel %vm1071, %v1473, 0
        %v1480 = vsel %vm1135, %v1475, 0
        %1482 = vmatprep.subr.bf16.mxu0 0
        %1483 = vmatpush1.bf16.msra.mxu0 %v1480
        %1484 = vmatprep.subr.bf16.mxu0 0
        %1485 = vmatpush1.bf16.msra.mxu0 0
        %1486 = vmatprep.subr.bf16.mxu0 0
        %1487 = vmatpush1.bf16.msra.mxu0 0
        %1488 = vmatprep.subr.bf16.mxu0 0
        %1489 = vmatpush1.bf16.msra.mxu0 0
        %1490 = vmatprep.subr.bf16.mxu0 0
        %1491 = vmatpush1.bf16.msra.mxu0 0
        %1492 = vmatprep.subr.bf16.mxu0 0
        %1493 = vmatpush1.bf16.msra.mxu0 0
        %1494 = vmatprep.subr.bf16.mxu0 0
        %1495 = vmatpush1.bf16.msra.mxu0 0
        %1496 = vmatprep.subr.bf16.mxu0 0
        %1497 = vmatpush1.bf16.msra.mxu0 0
        %1498 = vmatprep.subr.bf16.mxu0 0
        %1499 = vmatpush1.bf16.msra.mxu0 0
        %1500 = vmatprep.subr.bf16.mxu0 0
        %1501 = vmatpush1.bf16.msra.mxu0 0
        %1502 = vmatprep.subr.bf16.mxu0 0
        %1503 = vmatpush1.bf16.msra.mxu0 0
        %1504 = vmatprep.subr.bf16.mxu0 0
        %1505 = vmatpush1.bf16.msra.mxu0 0
        %1506 = vmatprep.subr.bf16.mxu0 0
        %1507 = vmatpush1.bf16.msra.mxu0 0
        %1508 = vmatprep.subr.bf16.mxu0 0
        %1509 = vmatpush1.bf16.msra.mxu0 0
        %1510 = vmatprep.subr.bf16.mxu0 0
        %1511 = vmatpush1.bf16.msra.mxu0 0
        %1512 = vmatprep.subr.bf16.mxu0 0
        %1513 = vmatpush1.bf16.msra.mxu0 0
        %1514 = vmatprep.mubr.bf16.mxu0 0
        %1515 = vmatmul.mubr.bf16.gmra.mrb[0].mxu0 %v1477
        %v1516 = vpop.f32.mrb[0].mxu0
        %v1517 = vadd.f32 0.0, %v1516
        %v1518 = vpop.f32.mrb[0].mxu0
        %v1519 = vpop.f32.mrb[0].mxu0
        %v1520 = vpop.f32.mrb[0].mxu0
        %1521 = vdwg.mxu0
        %1523 = vrot.lane.b32.xlu0 %v1517, 24
        %v1524 = vpop.permute.xlu0 %1523
        %vm1526 = vcmask 261312
        %1527 = vst.msk [vmem:[#allocation2] sm:$0xff] %vm1526, %v1524
        %v1528 = vld [vmem:[#allocation2] sm:$0xff]
        %v1529 = vpack.c.bf16 %v1528, %v1528
        %v1530 = vld [vmem:[%s807] sm:$0xf]
        %v1531 = vld [vmem:[%s807 + $0x4] sm:$0xf]
        %v1532 = vld [vmem:[%s807 + $0x8] sm:$0xf]
        %v1533 = vld [vmem:[%s807 + $0xc] sm:$0xf]
        %v1534 = vld [vmem:[%s815] sm:$0x1]
        %v1536 = vlaneseq
        %v1537 = vshrl.u32 %v1536, 7
        %v1538 = vsub.s32 0, %v1537
        %v1539 = vrot.slane %v1534, %v1538
        %v1545 = vunpack.c.l.b16 %v1530
        %v1546 = vunpack.c.l.b16 %v1531
        %v1547 = vunpack.c.l.b16 %v1532
        %v1548 = vunpack.c.l.b16 %v1533
        %v1549 = vpack.c.b16 %v1546, %v1545
        %v1550 = vpack.c.b16 %v1548, %v1547
        %v1554 = vsel %vm1020, %v1529, 0
        %1556 = vmatprep.subr.bf16.mxu0 0
        %1557 = vmatpush1.bf16.msra.mxu0 %v1549
        %1558 = vmatprep.subr.bf16.mxu0 0
        %1559 = vmatpush1.bf16.msra.mxu0 %v1550
        %1560 = vmatprep.subr.bf16.mxu0 0
        %1561 = vmatpush1.bf16.msra.mxu0 0
        %1562 = vmatprep.subr.bf16.mxu0 0
        %1563 = vmatpush1.bf16.msra.mxu0 0
        %1564 = vmatprep.subr.bf16.mxu0 0
        %1565 = vmatpush1.bf16.msra.mxu0 0
        %1566 = vmatprep.subr.bf16.mxu0 0
        %1567 = vmatpush1.bf16.msra.mxu0 0
        %1568 = vmatprep.subr.bf16.mxu0 0
        %1569 = vmatpush1.bf16.msra.mxu0 0
        %1570 = vmatprep.subr.bf16.mxu0 0
        %1571 = vmatpush1.bf16.msra.mxu0 0
        %1572 = vmatprep.subr.bf16.mxu0 0
        %1573 = vmatpush1.bf16.msra.mxu0 0
        %1574 = vmatprep.subr.bf16.mxu0 0
        %1575 = vmatpush1.bf16.msra.mxu0 0
        %1576 = vmatprep.subr.bf16.mxu0 0
        %1577 = vmatpush1.bf16.msra.mxu0 0
        %1578 = vmatprep.subr.bf16.mxu0 0
        %1579 = vmatpush1.bf16.msra.mxu0 0
        %1580 = vmatprep.subr.bf16.mxu0 0
        %1581 = vmatpush1.bf16.msra.mxu0 0
        %1582 = vmatprep.subr.bf16.mxu0 0
        %1583 = vmatpush1.bf16.msra.mxu0 0
        %1584 = vmatprep.subr.bf16.mxu0 0
        %1585 = vmatpush1.bf16.msra.mxu0 0
        %1586 = vmatprep.subr.bf16.mxu0 0
        %1587 = vmatpush1.bf16.msra.mxu0 0
        %1588 = vmatprep.mubr.bf16.mxu0 0
        %1589 = vmatmul.mubr.bf16.gmra.mrb[0].mxu0 %v1554
        %v1590 = vpop.f32.mrb[0].mxu0
        %v1591 = vadd.f32 %v1539, %v1590
        %v1592 = vpop.f32.mrb[0].mxu0
        %v1593 = vpop.f32.mrb[0].mxu0
        %v1594 = vpop.f32.mrb[0].mxu0
        %1595 = vdwg.mxu0
        %v1596 = vadd.f32 %v995, %v1591
        %v1597 = vsel %vm1020, %v1596, 0.0
        %1598 = vadd.xlane.f32.xlu0 %v1597
        %v1599 = vpop.xlane.xlu0 %1598
        %v1600 = vrcp.pop 32.0
        %v1601 = vmul.f32 %v1599, %v1600
        %v1602 = vmul.f32 %v1596, %v1596
        %v1603 = vsel %vm1020, %v1602, 0.0
        %1604 = vadd.xlane.f32.xlu0 %v1603
        %v1605 = vpop.xlane.xlu0 %1604
        %v1606 = vmul.f32 %v1605, %v1600
        %v1607 = vmul.f32 %v1601, %v1601
        %v1608 = vsub.f32 %v1606, %v1607
        %v1609 = vsub.f32 %v1596, %v1601
        %v1610 = vadd.f32 %v1608, 1e-05
        %v1611 = vrsqrt.pop %v1610
        %v1612 = vmul.f32 %v1609, %v1611
        %v1613 = vld [vmem:[%s823] sm:$0x1]
        %v1615 = vlaneseq
        %v1616 = vshrl.u32 %v1615, 7
        %v1617 = vsub.s32 0, %v1616
        %v1618 = vrot.slane %v1613, %v1617
        %v1620 = vmul.f32 %v1612, %v1618
        %v1621 = vld [vmem:[%s831] sm:$0x1]
        %v1623 = vlaneseq
        %v1624 = vshrl.u32 %v1623, 7
        %v1625 = vsub.s32 0, %v1624
        %v1626 = vrot.slane %v1621, %v1625
        %v1628 = vadd.f32 %v1620, %v1626
        %v1629 = vpack.c.bf16 %v1628, %v1628
        %v1630 = vld [vmem:[%s840] sm:$0xf]
        %v1631 = vld [vmem:[%s840 + $0x4] sm:$0xf]
        %v1632 = vld [vmem:[%s840 + $0x8] sm:$0xf]
        %v1633 = vld [vmem:[%s840 + $0xc] sm:$0xf]
        %v1634 = vld [vmem:[%s848] sm:$0x1]
        %v1636 = vlaneseq
        %v1637 = vshrl.u32 %v1636, 7
        %v1638 = vsub.s32 0, %v1637
        %v1639 = vrot.slane %v1634, %v1638
        %v1645 = vunpack.c.l.b16 %v1630
        %v1646 = vunpack.c.l.b16 %v1631
        %v1647 = vunpack.c.l.b16 %v1632
        %v1648 = vunpack.c.l.b16 %v1633
        %v1649 = vpack.c.b16 %v1646, %v1645
        %v1650 = vpack.c.b16 %v1648, %v1647
        %v1654 = vsel %vm1020, %v1629, 0
        %1656 = vmatprep.subr.bf16.mxu0 0
        %1657 = vmatpush1.bf16.msra.mxu0 %v1649
        %1658 = vmatprep.subr.bf16.mxu0 0
        %1659 = vmatpush1.bf16.msra.mxu0 %v1650
        %1660 = vmatprep.subr.bf16.mxu0 0
        %1661 = vmatpush1.bf16.msra.mxu0 0
        %1662 = vmatprep.subr.bf16.mxu0 0
        %1663 = vmatpush1.bf16.msra.mxu0 0
        %1664 = vmatprep.subr.bf16.mxu0 0
        %1665 = vmatpush1.bf16.msra.mxu0 0
        %1666 = vmatprep.subr.bf16.mxu0 0
        %1667 = vmatpush1.bf16.msra.mxu0 0
        %1668 = vmatprep.subr.bf16.mxu0 0
        %1669 = vmatpush1.bf16.msra.mxu0 0
        %1670 = vmatprep.subr.bf16.mxu0 0
        %1671 = vmatpush1.bf16.msra.mxu0 0
        %1672 = vmatprep.subr.bf16.mxu0 0
        %1673 = vmatpush1.bf16.msra.mxu0 0
        %1674 = vmatprep.subr.bf16.mxu0 0
        %1675 = vmatpush1.bf16.msra.mxu0 0
        %1676 = vmatprep.subr.bf16.mxu0 0
        %1677 = vmatpush1.bf16.msra.mxu0 0
        %1678 = vmatprep.subr.bf16.mxu0 0
        %1679 = vmatpush1.bf16.msra.mxu0 0
        %1680 = vmatprep.subr.bf16.mxu0 0
        %1681 = vmatpush1.bf16.msra.mxu0 0
        %1682 = vmatprep.subr.bf16.mxu0 0
        %1683 = vmatpush1.bf16.msra.mxu0 0
        %1684 = vmatprep.subr.bf16.mxu0 0
        %1685 = vmatpush1.bf16.msra.mxu0 0
        %1686 = vmatprep.subr.bf16.mxu0 0
        %1687 = vmatpush1.bf16.msra.mxu0 0
        %1688 = vmatprep.mubr.bf16.mxu0 0
        %1689 = vmatmul.mubr.bf16.gmra.mrb[0].mxu0 %v1654
        %v1690 = vpop.f32.mrb[0].mxu0
        %v1691 = vadd.f32 %v1639, %v1690
        %v1692 = vpop.f32.mrb[0].mxu0
        %v1693 = vpop.f32.mrb[0].mxu0
        %v1694 = vpop.f32.mrb[0].mxu0
        %1695 = vdwg.mxu0
        %v1696 = vmax.f32 %v1691, 0.0
        %v1697 = vpack.c.bf16 %v1696, %v1696
        %v1698 = vld [vmem:[%s857] sm:$0xf]
        %v1699 = vld [vmem:[%s857 + $0x4] sm:$0xf]
        %v1700 = vld [vmem:[%s857 + $0x8] sm:$0xf]
        %v1701 = vld [vmem:[%s857 + $0xc] sm:$0xf]
        %v1702 = vld [vmem:[%s857 + $0x10] sm:$0xf]
        %v1703 = vld [vmem:[%s857 + $0x14] sm:$0xf]
        %v1704 = vld [vmem:[%s857 + $0x18] sm:$0xf]
        %v1705 = vld [vmem:[%s857 + $0x1c] sm:$0xf]
        %v1706 = vld [vmem:[%s865] sm:$0x1]
        %v1708 = vlaneseq
        %v1709 = vshrl.u32 %v1708, 7
        %v1710 = vsub.s32 0, %v1709
        %v1711 = vrot.slane %v1706, %v1710
        %v1721 = vunpack.c.l.b16 %v1698
        %v1722 = vunpack.c.l.b16 %v1699
        %v1723 = vunpack.c.l.b16 %v1700
        %v1724 = vunpack.c.l.b16 %v1701
        %v1725 = vunpack.c.l.b16 %v1702
        %v1726 = vunpack.c.l.b16 %v1703
        %v1727 = vunpack.c.l.b16 %v1704
        %v1728 = vunpack.c.l.b16 %v1705
        %v1729 = vpack.c.b16 %v1722, %v1721
        %v1730 = vpack.c.b16 %v1724, %v1723
        %v1731 = vpack.c.b16 %v1726, %v1725
        %v1732 = vpack.c.b16 %v1728, %v1727
        %vm1737 = vcmask 523264
        %v1739 = vsel %vm1737, %v1697, 0
        %1741 = vmatprep.subr.bf16.mxu0 0
        %1742 = vmatpush1.bf16.msra.mxu0 %v1729
        %1743 = vmatprep.subr.bf16.mxu0 0
        %1744 = vmatpush1.bf16.msra.mxu0 %v1730
        %1745 = vmatprep.subr.bf16.mxu0 0
        %1746 = vmatpush1.bf16.msra.mxu0 %v1731
        %1747 = vmatprep.subr.bf16.mxu0 0
        %1748 = vmatpush1.bf16.msra.mxu0 %v1732
        %1749 = vmatprep.subr.bf16.mxu0 0
        %1750 = vmatpush1.bf16.msra.mxu0 0
        %1751 = vmatprep.subr.bf16.mxu0 0
        %1752 = vmatpush1.bf16.msra.mxu0 0
        %1753 = vmatprep.subr.bf16.mxu0 0
        %1754 = vmatpush1.bf16.msra.mxu0 0
        %1755 = vmatprep.subr.bf16.mxu0 0
        %1756 = vmatpush1.bf16.msra.mxu0 0
        %1757 = vmatprep.subr.bf16.mxu0 0
        %1758 = vmatpush1.bf16.msra.mxu0 0
        %1759 = vmatprep.subr.bf16.mxu0 0
        %1760 = vmatpush1.bf16.msra.mxu0 0
        %1761 = vmatprep.subr.bf16.mxu0 0
        %1762 = vmatpush1.bf16.msra.mxu0 0
        %1763 = vmatprep.subr.bf16.mxu0 0
        %1764 = vmatpush1.bf16.msra.mxu0 0
        %1765 = vmatprep.subr.bf16.mxu0 0
        %1766 = vmatpush1.bf16.msra.mxu0 0
        %1767 = vmatprep.subr.bf16.mxu0 0
        %1768 = vmatpush1.bf16.msra.mxu0 0
        %1769 = vmatprep.subr.bf16.mxu0 0
        %1770 = vmatpush1.bf16.msra.mxu0 0
        %1771 = vmatprep.subr.bf16.mxu0 0
        %1772 = vmatpush1.bf16.msra.mxu0 0
        %1773 = vmatprep.mubr.bf16.mxu0 0
        %1774 = vmatmul.mubr.bf16.gmra.mrb[0].mxu0 %v1739
        %v1775 = vpop.f32.mrb[0].mxu0
        %v1776 = vadd.f32 %v1711, %v1775
        %v1777 = vpop.f32.mrb[0].mxu0
        %v1778 = vpop.f32.mrb[0].mxu0
        %v1779 = vpop.f32.mrb[0].mxu0
        %1780 = vdwg.mxu0
        %v1781 = vadd.f32 %v1596, %v1776
        %v1782 = vsel %vm1020, %v1781, 0.0
        %1783 = vadd.xlane.f32.xlu0 %v1782
        %v1784 = vpop.xlane.xlu0 %1783
        %v1785 = vmul.f32 %v1784, %v1600
        %v1786 = vmul.f32 %v1781, %v1781
        %v1787 = vsel %vm1020, %v1786, 0.0
        %1788 = vadd.xlane.f32.xlu0 %v1787
        %v1789 = vpop.xlane.xlu0 %1788
        %v1790 = vmul.f32 %v1789, %v1600
        %v1791 = vmul.f32 %v1785, %v1785
        %v1792 = vsub.f32 %v1790, %v1791
        %v1793 = vsub.f32 %v1781, %v1785
        %v1794 = vadd.f32 %v1792, 1e-05
        %v1795 = vrsqrt.pop %v1794
        %v1796 = vmul.f32 %v1793, %v1795
        %v1797 = vld [vmem:[%s873] sm:$0x1]
        %v1799 = vlaneseq
        %v1800 = vshrl.u32 %v1799, 7
        %v1801 = vsub.s32 0, %v1800
        %v1802 = vrot.slane %v1797, %v1801
        %v1804 = vmul.f32 %v1796, %v1802
        %v1805 = vld [vmem:[%s881] sm:$0x1]
        %v1807 = vlaneseq
        %v1808 = vshrl.u32 %v1807, 7
        %v1809 = vsub.s32 0, %v1808
        %v1810 = vrot.slane %v1805, %v1809
        %v1812 = vadd.f32 %v1804, %v1810
        %1813 = vst.msk [vmem:[%s984] sm:$0xff] %vm1020, %v1812
        %s1814 = sand.u32 %s458, 1
        %s1815 = scalar_lea.sflag [#allocation5], %s1814
        %s1816 = sand.u32 %s458, 1
        %s1817 = smul.addr %s1816, 8
        %s1818 = scalar_lea.vmem [#allocation27], %s1817
        // Predicated region
        $region145: #{transformer_encoder.1} parent=79 // pred_check
          %p1819 = pneg %p468
        $region146: #{transformer_encoder.1} parent=79 // pred_check_branch
          %1821 = sbr.rel (%p1819) target = $region148
        $region147: #{transformer_encoder.1} parent=79 // pred_region
          %s1823 = ssub.s32 128, 128
          %1824 = vsyncadd %s1815, %s1823
          %s1825 = smul.addr %s57, 128
          %s1826 = scalar_lea.hbm %s15, %s1825
          %s1828 = sshll.u32 %s1818, 4
          %s1829 = int_to_ptr.vmem [resolvable:$true] %s1828
          %1831 = dma.vmem_to_hbm [thread:$0]  %s1829, 128, %s1826, %s1815
        $region148: #{transformer_encoder.1} parent=79 // pred_fallthru
          _
      $region80: #{transformer_encoder.1} parent=5 // pred_fallthru
        _
      %p1832 = scmp.le.s32.totalorder 2, %s48
      // Predicated region
      $region149: #{transformer_encoder.1} parent=5 // pred_check
        %p1833 = pneg %p1832
      $region150: #{transformer_encoder.1} parent=5 // pred_check_branch
        %1835 = sbr.rel (%p1833) target = $region152
      $region151: #{transformer_encoder.1} parent=5 // pred_region
        %s1836 = ssub.s32 %s48, 2
        // Predicated region
        $region153: #{transformer_encoder.1} parent=151 // pred_check
          %p1837 = pneg %p474
        $region154: #{transformer_encoder.1} parent=151 // pred_check_branch
          %1839 = sbr.rel (%p1837) target = $region156
        $region155: #{transformer_encoder.1} parent=151 // pred_region
          %s1840 = sand.u32 %s459, 1
          %s1841 = scalar_lea.sflag [#allocation5], %s1840
          %s1842 = sand.u32 %s459, 1
          %s1843 = smul.addr %s1842, 8
          %s1844 = scalar_lea.vmem [#allocation27], %s1843
          %1845 = dma.done %s1841, 128
        $region156: #{transformer_encoder.1} parent=151 // pred_fallthru
          _
      $region152: #{transformer_encoder.1} parent=5 // pred_fallthru
        _
    $region6: #{transformer_encoder.1} parent=1 // loop_footer
      %s52 = sadd.s32 1, %s48
    $region7: #{transformer_encoder.1} parent=1 // loop_footer_branch
      %47 = sbr.rel target = $region3
    $region8: #{transformer_encoder.1} parent=1 // loop_exit
      _
    %1846 = vsyncpa [#allocation4], 1
    %s1847 = scalar_lea.sflag [#allocation4], 1
    %1848 = vsyncpa %s1847, 1
    %1849 = vsyncpa [#allocation7], 1
    %s1850 = scalar_lea.sflag [#allocation7], 1
    %1851 = vsyncpa %s1850, 1
    %1852 = vsyncpa [#allocation10], 1
    %s1853 = scalar_lea.sflag [#allocation10], 1
    %1854 = vsyncpa %s1853, 1
    %1855 = vsyncpa [#allocation13], 1
    %s1856 = scalar_lea.sflag [#allocation13], 1
    %1857 = vsyncpa %s1856, 1
    %1858 = vsyncpa [#allocation16], 1
    %s1859 = scalar_lea.sflag [#allocation16], 1
    %1860 = vsyncpa %s1859, 1
    %1861 = vsyncpa [#allocation19], 1
    %s1862 = scalar_lea.sflag [#allocation19], 1
    %1863 = vsyncpa %s1862, 1
    %1864 = vsyncpa [#allocation22], 1
    %s1865 = scalar_lea.sflag [#allocation22], 1
    %1866 = vsyncpa %s1865, 1
    %1867 = vsyncpa [#allocation25], 1
    %s1868 = scalar_lea.sflag [#allocation25], 1
    %1869 = vsyncpa %s1868, 1
    %1870 = vsyncpa [#allocation5], 1
    %s1871 = scalar_lea.sflag [#allocation5], 1
    %1872 = vsyncpa %s1871, 1

</llo_original>
